<compile_context>
chip_gen: v6e
topology: v6e:2x2x1
jax: 0.10.0
libtpu: 0.0.40
codegen_flags: <defaults>
</compile_context>

<pallas_src>
import jax
import jax.numpy as jnp
from jax import lax
from jax.experimental import pallas as pl
from jax.experimental.pallas import tpu as pltpu


def _link_predictor_kernel(
    xi_ref, xj_ref, pi_ref, pj_ref,     # activation tiles (VMEM), f32
    w1_ref, b1_ref, w2_ref, b2_ref,     # hidden-layer params (VMEM)
    w3c_ref, wpos_ref,                  # folded final projection rows (VMEM)
    bias_ref,                           # folded scalar bias (SMEM, (1,))
    out_ref,                            # [1, TB] lane-dense output block
):
    cd = w1_ref.dtype                   # compute dtype for MXU operands (bf16 or f32)

    # ---- elementwise hadamard of the endpoint embeddings (f32 VPU) ----
    x = xi_ref[...] * xj_ref[...]                                   # [TB, C_in]

    # ---- positional encoding: elementwise squared diff (reduced later on MXU) ----
    d = pi_ref[...] - pj_ref[...]                                   # [TB, P]
    dd = d * d

    # ---- MLP: Linear -> ReLU (dropout == identity in eval) x (num_layers-1) ----
    h = jnp.dot(x.astype(cd), w1_ref[...], preferred_element_type=jnp.float32)
    h = jnp.maximum(h + b1_ref[...], 0.0)                           # [TB, H]
    # TODO(synk): training-mode dropout would need pltpu.prng_seed/prng_random_bits.
    h = jnp.dot(h.astype(cd), w2_ref[...], preferred_element_type=jnp.float32)
    h = jnp.maximum(h + b2_ref[...], 0.0)                           # [TB, H]

    # ---- final lins[-1] fused with self.output(Linear(2,1)), lane-major ----
    # contract the feature axis of both operands: [1,H] x [TB,H] -> [1,TB]
    dn = (((1,), (1,)), ((), ()))
    z_row = lax.dot_general(w3c_ref[...], h.astype(cd), dn,
                            preferred_element_type=jnp.float32)     # [1, TB]
    p_row = lax.dot_general(wpos_ref[...], dd.astype(cd), dn,
                            preferred_element_type=jnp.float32)     # [1, TB]
    o = z_row + p_row + bias_ref[0]
    out_ref[...] = jax.nn.sigmoid(o).astype(out_ref.dtype)


def prepare_params(raw_params, *, pos_dim, compute_dtype=jnp.bfloat16):
    """One-time host-side preprocessing: fold Linear(2,1), cast MXU weights."""
    w1, b1, w2, b2, w3, b3, wo, bo = raw_params
    w3c = (w3.reshape(-1) * wo[0]).reshape(1, -1)                   # [1, H]
    wpos = jnp.full((1, pos_dim), wo[1], jnp.float32)               # [1, P]
    bias = (b3.reshape(()) * wo[0] + bo.reshape(())).reshape(1)     # (1,)
    return (
        w1.astype(compute_dtype), b1.astype(jnp.float32),
        w2.astype(compute_dtype), b2.astype(jnp.float32),
        w3c.astype(compute_dtype), wpos.astype(compute_dtype),
        bias.astype(jnp.float32),
    )


def link_predictor_forward(x_i, x_j, pos_i, pos_j, params, *, tile_b=512):
    """Full LinkPredictor forward through one Pallas kernel, tiled over batch."""
    B, C_in = x_i.shape
    P = pos_i.shape[1]
    w1, b1, w2, b2, w3c, wpos, bias = params
    H = w1.shape[1]

    num_tiles = pl.cdiv(B, tile_b)
    B_pad = num_tiles * tile_b
    if B_pad != B:  # tail guard: zero-pad the batch, slice result back below
        pad = ((0, B_pad - B), (0, 0))
        x_i, x_j = jnp.pad(x_i, pad), jnp.pad(x_j, pad)
        pos_i, pos_j = jnp.pad(pos_i, pad), jnp.pad(pos_j, pad)

    act = lambda cols: pl.BlockSpec((tile_b, cols), lambda i: (i, 0))
    cst = lambda r, c: pl.BlockSpec((r, c), lambda i: (0, 0))

    out = pl.pallas_call(
        _link_predictor_kernel,
        out_shape=jax.ShapeDtypeStruct((1, B_pad), jnp.float32),
        grid_spec=pltpu.PrefetchScalarGridSpec(
            num_scalar_prefetch=0,
            grid=(num_tiles,),
            in_specs=[
                act(C_in),            # x_i
                act(C_in),            # x_j
                act(P),               # pos_i
                act(P),               # pos_j
                cst(C_in, H),         # w1 [in, hidden]
                cst(1, H),            # b1
                cst(H, H),            # w2 [hidden, hidden]
                cst(1, H),            # b2
                cst(1, H),            # w3c = w3 * wo[0]   (row)
                cst(1, P),            # wpos = wo[1] * ones
                pl.BlockSpec(memory_space=pltpu.MemorySpace.SMEM),  # bias (1,)
            ],
            out_specs=pl.BlockSpec((1, tile_b), lambda i: (0, i)),  # lane-dense row
        ),
        compiler_params=pltpu.CompilerParams(
            dimension_semantics=("parallel",),          # shards tiles across v7x cores
            vmem_limit_bytes=32 * 1024 * 1024,          # explicit: safe on v7x 64 MiB
        ),
    )(x_i, x_j, pos_i, pos_j, w1, b1, w2, b2, w3c, wpos, bias)

    return out.reshape(-1)[:B, None]                    # back to [B, 1]


def _reference_forward(x_i, x_j, pos_i, pos_j, raw_params):
    """Pure-JAX reference mirroring the PyTorch forward (eval mode)."""
    w1, b1, w2, b2, w3, b3, wo, bo = raw_params
    x = x_i * x_j
    pos = jnp.sum((pos_i - pos_j) ** 2, axis=-1, keepdims=True)
    x = jax.nn.relu(x @ w1 + b1)
    x = jax.nn.relu(x @ w2 + b2)
    x = x @ w3 + b3
    cat = jnp.concatenate([x, pos], axis=1)
    out = cat @ wo.reshape(2, 1) + bo.reshape(1, 1)
    return jax.nn.sigmoid(out)


if __name__ == "__main__":
    # in_channels = hidden = 32, out_channels = 1, num_layers = 3, pos dim = 8.
    # B = 1000 exercises the ragged-tail path (padded to 1024 -> grid = 2, which
    # also spans both TensorCores on v7x).
    B, C_in, H, P = 1000, 32, 32, 8

    key = jax.random.PRNGKey(0)
    keys = jax.random.split(key, 12)

    x_i = jax.random.normal(keys[0], (B, C_in), jnp.float32)
    x_j = jax.random.normal(keys[1], (B, C_in), jnp.float32)
    pos_i = jax.random.normal(keys[2], (B, P), jnp.float32)
    pos_j = jax.random.normal(keys[3], (B, P), jnp.float32)

    def _init(k, shape, fan_in):
        bound = 1.0 / jnp.sqrt(fan_in)
        return jax.random.uniform(k, shape, jnp.float32, -bound, bound)

    w1 = _init(keys[4], (C_in, H), C_in)
    b1 = _init(keys[5], (1, H), C_in)
    w2 = _init(keys[6], (H, H), H)
    b2 = _init(keys[7], (1, H), H)
    w3 = _init(keys[8], (H, 1), H)
    b3 = _init(keys[9], (1, 1), H)
    wo = _init(keys[10], (2,), 2)    # self.output weight [w_x, w_pos]
    bo = _init(keys[11], (1,), 2)    # self.output bias

    raw = (w1, b1, w2, b2, w3, b3, wo, bo)
    ref = _reference_forward(x_i, x_j, pos_i, pos_j, raw)

    # exact (f32 MXU operand) path
    p32 = prepare_params(raw, pos_dim=P, compute_dtype=jnp.float32)
    out32 = jax.block_until_ready(link_predictor_forward(x_i, x_j, pos_i, pos_j, p32))
    assert out32.shape == (B, 1)
    assert jnp.allclose(out32, ref, atol=1e-4, rtol=1e-4), float(jnp.max(jnp.abs(out32 - ref)))

    # bf16 MXU-operand fast path (v6e/v7x); f32 accumulation retained
    pbf = prepare_params(raw, pos_dim=P, compute_dtype=jnp.bfloat16)
    outbf = jax.block_until_ready(link_predictor_forward(x_i, x_j, pos_i, pos_j, pbf))
    assert outbf.shape == (B, 1)
    assert float(jnp.max(jnp.abs(outbf - ref))) < 2e-2

    print("KERNEL_OK")
</pallas_src>

<mosaic_0001>
module attributes {stable_mosaic.version = 11 : i64} {
  func.func @_link_predictor_kernel(%arg0: i32, %arg1: memref<512x32xf32, #tpu.memory_space<vmem>>, %arg2: memref<512x32xf32, #tpu.memory_space<vmem>>, %arg3: memref<512x8xf32, #tpu.memory_space<vmem>>, %arg4: memref<512x8xf32, #tpu.memory_space<vmem>>, %arg5: memref<32x32xf32, #tpu.memory_space<vmem>>, %arg6: memref<1x32xf32, #tpu.memory_space<vmem>>, %arg7: memref<32x32xf32, #tpu.memory_space<vmem>>, %arg8: memref<1x32xf32, #tpu.memory_space<vmem>>, %arg9: memref<1x32xf32, #tpu.memory_space<vmem>>, %arg10: memref<1x8xf32, #tpu.memory_space<vmem>>, %arg11: memref<1xf32, #tpu.memory_space<smem>>, %arg12: memref<1x512xf32, #tpu.memory_space<vmem>>) attributes {dimension_semantics = [#tpu.dimension_semantics<parallel>], iteration_bounds = array<i64: 2>, scalar_prefetch = 0 : i64, scratch_operands = 0 : i64, tpu.core_type = #tpu.core_type<tc>, window_params = [{transform_indices = @transform_0, window_bounds = array<i64: 512, 32>}, {transform_indices = @transform_1, window_bounds = array<i64: 512, 32>}, {transform_indices = @transform_2, window_bounds = array<i64: 512, 8>}, {transform_indices = @transform_3, window_bounds = array<i64: 512, 8>}, {pipeline_mode = #tpu.pipeline_mode<synchronous>, transform_indices = @transform_4, window_bounds = array<i64: 32, 32>}, {pipeline_mode = #tpu.pipeline_mode<synchronous>, transform_indices = @transform_5, window_bounds = array<i64: 1, 32>}, {pipeline_mode = #tpu.pipeline_mode<synchronous>, transform_indices = @transform_6, window_bounds = array<i64: 32, 32>}, {pipeline_mode = #tpu.pipeline_mode<synchronous>, transform_indices = @transform_7, window_bounds = array<i64: 1, 32>}, {pipeline_mode = #tpu.pipeline_mode<synchronous>, transform_indices = @transform_8, window_bounds = array<i64: 1, 32>}, {pipeline_mode = #tpu.pipeline_mode<synchronous>, transform_indices = @transform_9, window_bounds = array<i64: 1, 8>}, {transform_indices = @transform_10, window_bounds = array<i64: 1>}, {transform_indices = @transform_11, window_bounds = array<i64: 1, 512>}]} {
    %c0 = arith.constant 0 : index
    %c0_0 = arith.constant 0 : index
    %0 = vector.load %arg1[%c0, %c0_0] : memref<512x32xf32, #tpu.memory_space<vmem>>, vector<512x32xf32>
    %c0_1 = arith.constant 0 : index
    %c0_2 = arith.constant 0 : index
    %1 = vector.load %arg2[%c0_1, %c0_2] : memref<512x32xf32, #tpu.memory_space<vmem>>, vector<512x32xf32>
    %2 = arith.mulf %0, %1 : vector<512x32xf32>
    %c0_3 = arith.constant 0 : index
    %c0_4 = arith.constant 0 : index
    %3 = vector.load %arg3[%c0_3, %c0_4] : memref<512x8xf32, #tpu.memory_space<vmem>>, vector<512x8xf32>
    %c0_5 = arith.constant 0 : index
    %c0_6 = arith.constant 0 : index
    %4 = vector.load %arg4[%c0_5, %c0_6] : memref<512x8xf32, #tpu.memory_space<vmem>>, vector<512x8xf32>
    %5 = arith.subf %3, %4 : vector<512x8xf32>
    %6 = arith.mulf %5, %5 : vector<512x8xf32>
    %c0_7 = arith.constant 0 : index
    %c0_8 = arith.constant 0 : index
    %7 = vector.load %arg5[%c0_7, %c0_8] : memref<32x32xf32, #tpu.memory_space<vmem>>, vector<32x32xf32>
    %cst = arith.constant dense<0.000000e+00> : vector<512x32xf32>
    %8 = tpu.matmul %2, %7, %cst {dimension_numbers = #tpu.dot_dimension_numbers<[1], [0], [0], [1], [0, 0, 1, 1], [], []>} : vector<512x32xf32>, vector<32x32xf32>, vector<512x32xf32> -> vector<512x32xf32>
    %c0_9 = arith.constant 0 : index
    %c0_10 = arith.constant 0 : index
    %9 = vector.load %arg6[%c0_9, %c0_10] : memref<1x32xf32, #tpu.memory_space<vmem>>, vector<1x32xf32>
    %10 = vector.broadcast %9 : vector<1x32xf32> to vector<512x32xf32>
    %11 = arith.addf %8, %10 : vector<512x32xf32>
    %cst_11 = arith.constant 0.000000e+00 : f32
    %12 = vector.broadcast %cst_11 : f32 to vector<512x32xf32>
    %13 = arith.maximumf %11, %12 : vector<512x32xf32>
    %c0_12 = arith.constant 0 : index
    %c0_13 = arith.constant 0 : index
    %14 = vector.load %arg7[%c0_12, %c0_13] : memref<32x32xf32, #tpu.memory_space<vmem>>, vector<32x32xf32>
    %cst_14 = arith.constant dense<0.000000e+00> : vector<512x32xf32>
    %15 = tpu.matmul %13, %14, %cst_14 {dimension_numbers = #tpu.dot_dimension_numbers<[1], [0], [0], [1], [0, 0, 1, 1], [], []>} : vector<512x32xf32>, vector<32x32xf32>, vector<512x32xf32> -> vector<512x32xf32>
    %c0_15 = arith.constant 0 : index
    %c0_16 = arith.constant 0 : index
    %16 = vector.load %arg8[%c0_15, %c0_16] : memref<1x32xf32, #tpu.memory_space<vmem>>, vector<1x32xf32>
    %17 = vector.broadcast %16 : vector<1x32xf32> to vector<512x32xf32>
    %18 = arith.addf %15, %17 : vector<512x32xf32>
    %cst_17 = arith.constant 0.000000e+00 : f32
    %19 = vector.broadcast %cst_17 : f32 to vector<512x32xf32>
    %20 = arith.maximumf %18, %19 : vector<512x32xf32>
    %c0_18 = arith.constant 0 : index
    %c0_19 = arith.constant 0 : index
    %21 = vector.load %arg9[%c0_18, %c0_19] : memref<1x32xf32, #tpu.memory_space<vmem>>, vector<1x32xf32>
    %cst_20 = arith.constant dense<0.000000e+00> : vector<1x512xf32>
    %22 = tpu.matmul %21, %20, %cst_20 {dimension_numbers = #tpu.dot_dimension_numbers<[1], [1], [0], [0], [0, 0, 1, 0], [], []>} : vector<1x32xf32>, vector<512x32xf32>, vector<1x512xf32> -> vector<1x512xf32>
    %c0_21 = arith.constant 0 : index
    %c0_22 = arith.constant 0 : index
    %23 = vector.load %arg10[%c0_21, %c0_22] : memref<1x8xf32, #tpu.memory_space<vmem>>, vector<1x8xf32>
    %cst_23 = arith.constant dense<0.000000e+00> : vector<1x512xf32>
    %24 = tpu.matmul %23, %6, %cst_23 {dimension_numbers = #tpu.dot_dimension_numbers<[1], [1], [0], [0], [0, 0, 1, 0], [], []>} : vector<1x8xf32>, vector<512x8xf32>, vector<1x512xf32> -> vector<1x512xf32>
    %25 = arith.addf %22, %24 : vector<1x512xf32>
    %c0_24 = arith.constant 0 : index
    %26 = memref.load %arg11[%c0_24] : memref<1xf32, #tpu.memory_space<smem>>
    %27 = vector.broadcast %26 : f32 to vector<1x512xf32>
    %28 = arith.addf %25, %27 : vector<1x512xf32>
    %29 = arith.negf %28 : vector<1x512xf32>
    %30 = math.exp %29 : vector<1x512xf32>
    %cst_25 = arith.constant 1.000000e+00 : f32
    %31 = vector.broadcast %cst_25 : f32 to vector<1x512xf32>
    %32 = arith.addf %31, %30 : vector<1x512xf32>
    %33 = arith.divf %31, %32 : vector<1x512xf32>
    %c0_26 = arith.constant 0 : index
    %c0_27 = arith.constant 0 : index
    %34 = vector.load %arg12[%c0_26, %c0_27] : memref<1x512xf32, #tpu.memory_space<vmem>>, vector<1x512xf32>
    tpu.vector_store %arg12[%c0_26, %c0_27], %33 {strides = array<i32>} : memref<1x512xf32, #tpu.memory_space<vmem>>, vector<1x512xf32>,
    return
  }
  func.func @transform_0(%arg0: i32) -> (i32, i32) {
    %c0_i32 = arith.constant 0 : i32
    %c0_i32_0 = arith.constant 0 : i32
    return %arg0, %c0_i32 : i32, i32
  }
  func.func @transform_1(%arg0: i32) -> (i32, i32) {
    %c0_i32 = arith.constant 0 : i32
    %c0_i32_0 = arith.constant 0 : i32
    return %arg0, %c0_i32 : i32, i32
  }
  func.func @transform_2(%arg0: i32) -> (i32, i32) {
    %c0_i32 = arith.constant 0 : i32
    %c0_i32_0 = arith.constant 0 : i32
    return %arg0, %c0_i32 : i32, i32
  }
  func.func @transform_3(%arg0: i32) -> (i32, i32) {
    %c0_i32 = arith.constant 0 : i32
    %c0_i32_0 = arith.constant 0 : i32
    return %arg0, %c0_i32 : i32, i32
  }
  func.func @transform_4(%arg0: i32) -> (i32, i32) {
    %c0_i32 = arith.constant 0 : i32
    %c0_i32_0 = arith.constant 0 : i32
    %c0_i32_1 = arith.constant 0 : i32
    return %c0_i32, %c0_i32_0 : i32, i32
  }
  func.func @transform_5(%arg0: i32) -> (i32, i32) {
    %c0_i32 = arith.constant 0 : i32
    %c0_i32_0 = arith.constant 0 : i32
    %c0_i32_1 = arith.constant 0 : i32
    return %c0_i32, %c0_i32_0 : i32, i32
  }
  func.func @transform_6(%arg0: i32) -> (i32, i32) {
    %c0_i32 = arith.constant 0 : i32
    %c0_i32_0 = arith.constant 0 : i32
    %c0_i32_1 = arith.constant 0 : i32
    return %c0_i32, %c0_i32_0 : i32, i32
  }
  func.func @transform_7(%arg0: i32) -> (i32, i32) {
    %c0_i32 = arith.constant 0 : i32
    %c0_i32_0 = arith.constant 0 : i32
    %c0_i32_1 = arith.constant 0 : i32
    return %c0_i32, %c0_i32_0 : i32, i32
  }
  func.func @transform_8(%arg0: i32) -> (i32, i32) {
    %c0_i32 = arith.constant 0 : i32
    %c0_i32_0 = arith.constant 0 : i32
    %c0_i32_1 = arith.constant 0 : i32
    return %c0_i32, %c0_i32_0 : i32, i32
  }
  func.func @transform_9(%arg0: i32) -> (i32, i32) {
    %c0_i32 = arith.constant 0 : i32
    %c0_i32_0 = arith.constant 0 : i32
    %c0_i32_1 = arith.constant 0 : i32
    return %c0_i32, %c0_i32_0 : i32, i32
  }
  func.func @transform_10(%arg0: i32) -> i32 {
    %c0_i32 = arith.constant 0 : i32
    %c0_i32_0 = arith.constant 0 : i32
    return %c0_i32 : i32
  }
  func.func @transform_11(%arg0: i32) -> (i32, i32) {
    %c0_i32 = arith.constant 0 : i32
    %c0_i32_0 = arith.constant 0 : i32
    return %c0_i32, %arg0 : i32, i32
  }
}

</mosaic_0001>

<llo_original>
// kernel: tpu_custom_call.1
$region0: #{tpu_custom_call.1}
  #allocation0 [shape = 'u32[]', space=smem, size = 0x4, offset = 0x4, fixed_abs, tag = 'smem constant byte address 0x4 - core index']
  #allocation1 [shape = 'u32[144,128]{1,0:T(1,128)}', space=vmem, size = 0x12000, scoped, tag = 'internal scratch']
  #allocation2 [shape = 'f32[1]{0:T(128)S(6)}', space=smem, size = 0x200, scoped, tag = 'scoped memory for tpu_custom_call.1']
  %s0 = inlined_call_operand.vmem [shape: f32[1024,32], index: 0, kind: input, shape index: {}]
  %s1 = inlined_call_operand.vmem [shape: f32[1024,32], index: 1, kind: input, shape index: {}]
  %s2 = inlined_call_operand.vmem [shape: f32[1024,8], index: 2, kind: input, shape index: {}]
  %s3 = inlined_call_operand.vmem [shape: f32[1024,8], index: 3, kind: input, shape index: {}]
  %s4 = inlined_call_operand.vmem [shape: f32[32,32], index: 4, kind: input, shape index: {}]
  %s5 = inlined_call_operand.vmem [shape: f32[1,32], index: 5, kind: input, shape index: {}]
  %s6 = inlined_call_operand.vmem [shape: f32[32,32], index: 6, kind: input, shape index: {}]
  %s7 = inlined_call_operand.vmem [shape: f32[1,32], index: 7, kind: input, shape index: {}]
  %s8 = inlined_call_operand.vmem [shape: f32[1,32], index: 8, kind: input, shape index: {}]
  %s9 = inlined_call_operand.vmem [shape: f32[1,8], index: 9, kind: input, shape index: {}]
  %s10 = inlined_call_operand.<no memory space> [shape: f32[1], index: 10, kind: input, shape index: {}]
  %s11 = inlined_call_operand.hbm [shape: f32[1,1024], index: 11, kind: output, shape index: {}]
  %s12 = sld [smem:[#allocation0]]
  $region77: #{tpu_custom_call.1} parent=0
    _
  %s14 = ssub.s32 1, %s12
  %s15 = scalar_select 0, %s14, %s12
  %16 = sst [smem:[#allocation2]] %s10
  $region1: #{tpu_custom_call.1} parent=0
    #allocation3 [shape = 'u8[4096]{0}', space=vmem, size = 0x1000, scoped, tag = 'output window, operand 0']
    #allocation4 [shape = 's32[2]{0}', space=sflag, size = 0x8, scoped, tag = 'scoped memory for tpu_custom_call.1']
    %17 = vsyncpa [#allocation4], 0
    %s18 = scalar_lea.sflag [#allocation4], 1
    %19 = vsyncpa %s18, 0
    loop: start=0, step=1, limit=4
    $region2: #{tpu_custom_call.1} parent=1 // loop_pre_header
      _
    $region3: #{tpu_custom_call.1} parent=1 // loop_header
      %s21 = sphi 0, %s25
      %p22 = scmp.ge.s32.totalorder %s21, 4
      %s31 = sphi 0, %s33
      %s34 = sphi 0, %s31
      %s35 = sphi 0, %s34
      %s51 = sphi 0, %s35
      %s57 = sphi 0, %s59
      %s60 = sphi 0, %s57
      %s61 = sphi 0, %s60
      %s77 = sphi 0, %s61
      %s83 = sphi 0, %s85
      %s86 = sphi 0, %s83
      %s87 = sphi 0, %s86
      %s103 = sphi 0, %s87
      %s109 = sphi 0, %s111
      %s112 = sphi 0, %s109
      %s113 = sphi 0, %s112
      %s129 = sphi 0, %s113
      %s133 = sphi 0, %s133
      %s135 = sphi 0, %s133
      %s136 = sphi 0, %s135
      %s150 = sphi 0, %s136
      %s154 = sphi 0, %s154
      %s156 = sphi 0, %s154
      %s157 = sphi 0, %s156
      %s171 = sphi 0, %s157
      %s175 = sphi 0, %s175
      %s177 = sphi 0, %s175
      %s178 = sphi 0, %s177
      %s192 = sphi 0, %s178
      %s196 = sphi 0, %s196
      %s198 = sphi 0, %s196
      %s199 = sphi 0, %s198
      %s213 = sphi 0, %s199
      %s217 = sphi 0, %s217
      %s219 = sphi 0, %s217
      %s220 = sphi 0, %s219
      %s234 = sphi 0, %s220
      %s238 = sphi 0, %s238
      %s240 = sphi 0, %s238
      %s241 = sphi 0, %s240
      %s255 = sphi 0, %s241
      %s259 = sphi 0, %s259
      %s261 = sphi 0, %s259
      %s262 = sphi 0, %s261
      %s276 = sphi 0, %s262
      %s282 = sphi 0, %s284
      %s285 = sphi 0, %s282
      %s286 = sphi 0, %s285
      %s302 = sphi 0, %s286
    $region4: #{tpu_custom_call.1} parent=1 // loop_header_branch
      %24 = sbr.rel (%p22) target = $region8
    $region5: #{tpu_custom_call.1} parent=1 // loop_body
      %s26 = ssub.s32 %s21, 1
      %s27 = ssub.s32 %s21, 2
      %s28 = sadd.s32 %s21, 1
      %s29 = ssub.s32 %s21, %s28
      %p30 = scmp.eq.s32.totalorder %s29, 0
      %s32 = sadd.s32 %s31, 1
      %s33 = scalar_select %p30, %s31, %s32
      %p36 = pneg %p30
      %p37 = scmp.eq.s32.totalorder %s21, 1
      %p38 = por %p36, %p37
      %p39 = scmp.ne.s32.totalorder %s31, %s34
      %p40 = scmp.eq.s32.totalorder %s21, 0
      %p41 = por %p39, %p40
      %p42 = scmp.ne.s32.totalorder %s31, %s34
      %p43 = scmp.eq.s32.totalorder %s26, 1
      %p44 = por %p42, %p43
      %p45 = scmp.ne.s32.totalorder %s34, %s35
      %p46 = scmp.eq.s32.totalorder %s26, 0
      %p47 = por %p45, %p46
      %p48 = scmp.ne.s32.totalorder %s34, %s35
      %p49 = scmp.eq.s32.totalorder %s27, 1
      %p50 = por %p48, %p49
      %p52 = scmp.ne.s32.totalorder %s35, %s51
      %p53 = scmp.eq.s32.totalorder %s27, 0
      %p54 = por %p52, %p53
      %s55 = ssub.s32 %s21, %s28
      %p56 = scmp.eq.s32.totalorder %s55, 0
      %s58 = sadd.s32 %s57, 1
      %s59 = scalar_select %p56, %s57, %s58
      %p62 = pneg %p56
      %p63 = scmp.eq.s32.totalorder %s21, 1
      %p64 = por %p62, %p63
      %p65 = scmp.ne.s32.totalorder %s57, %s60
      %p66 = scmp.eq.s32.totalorder %s21, 0
      %p67 = por %p65, %p66
      %p68 = scmp.ne.s32.totalorder %s57, %s60
      %p69 = scmp.eq.s32.totalorder %s26, 1
      %p70 = por %p68, %p69
      %p71 = scmp.ne.s32.totalorder %s60, %s61
      %p72 = scmp.eq.s32.totalorder %s26, 0
      %p73 = por %p71, %p72
      %p74 = scmp.ne.s32.totalorder %s60, %s61
      %p75 = scmp.eq.s32.totalorder %s27, 1
      %p76 = por %p74, %p75
      %p78 = scmp.ne.s32.totalorder %s61, %s77
      %p79 = scmp.eq.s32.totalorder %s27, 0
      %p80 = por %p78, %p79
      %s81 = ssub.s32 %s21, %s28
      %p82 = scmp.eq.s32.totalorder %s81, 0
      %s84 = sadd.s32 %s83, 1
      %s85 = scalar_select %p82, %s83, %s84
      %p88 = pneg %p82
      %p89 = scmp.eq.s32.totalorder %s21, 1
      %p90 = por %p88, %p89
      %p91 = scmp.ne.s32.totalorder %s83, %s86
      %p92 = scmp.eq.s32.totalorder %s21, 0
      %p93 = por %p91, %p92
      %p94 = scmp.ne.s32.totalorder %s83, %s86
      %p95 = scmp.eq.s32.totalorder %s26, 1
      %p96 = por %p94, %p95
      %p97 = scmp.ne.s32.totalorder %s86, %s87
      %p98 = scmp.eq.s32.totalorder %s26, 0
      %p99 = por %p97, %p98
      %p100 = scmp.ne.s32.totalorder %s86, %s87
      %p101 = scmp.eq.s32.totalorder %s27, 1
      %p102 = por %p100, %p101
      %p104 = scmp.ne.s32.totalorder %s87, %s103
      %p105 = scmp.eq.s32.totalorder %s27, 0
      %p106 = por %p104, %p105
      %s107 = ssub.s32 %s21, %s28
      %p108 = scmp.eq.s32.totalorder %s107, 0
      %s110 = sadd.s32 %s109, 1
      %s111 = scalar_select %p108, %s109, %s110
      %p114 = pneg %p108
      %p115 = scmp.eq.s32.totalorder %s21, 1
      %p116 = por %p114, %p115
      %p117 = scmp.ne.s32.totalorder %s109, %s112
      %p118 = scmp.eq.s32.totalorder %s21, 0
      %p119 = por %p117, %p118
      %p120 = scmp.ne.s32.totalorder %s109, %s112
      %p121 = scmp.eq.s32.totalorder %s26, 1
      %p122 = por %p120, %p121
      %p123 = scmp.ne.s32.totalorder %s112, %s113
      %p124 = scmp.eq.s32.totalorder %s26, 0
      %p125 = por %p123, %p124
      %p126 = scmp.ne.s32.totalorder %s112, %s113
      %p127 = scmp.eq.s32.totalorder %s27, 1
      %p128 = por %p126, %p127
      %p130 = scmp.ne.s32.totalorder %s113, %s129
      %p131 = scmp.eq.s32.totalorder %s27, 0
      %p132 = por %p130, %p131
      %s134 = sadd.s32 %s133, 1
      %p137 = scmp.eq.s32.totalorder %s21, 1
      %p138 = scmp.ne.s32.totalorder %s133, %s135
      %p139 = scmp.eq.s32.totalorder %s21, 0
      %p140 = por %p138, %p139
      %p141 = scmp.ne.s32.totalorder %s133, %s135
      %p142 = scmp.eq.s32.totalorder %s26, 1
      %p143 = por %p141, %p142
      %p144 = scmp.ne.s32.totalorder %s135, %s136
      %p145 = scmp.eq.s32.totalorder %s26, 0
      %p146 = por %p144, %p145
      %p147 = scmp.ne.s32.totalorder %s135, %s136
      %p148 = scmp.eq.s32.totalorder %s27, 1
      %p149 = por %p147, %p148
      %p151 = scmp.ne.s32.totalorder %s136, %s150
      %p152 = scmp.eq.s32.totalorder %s27, 0
      %p153 = por %p151, %p152
      %s155 = sadd.s32 %s154, 1
      %p158 = scmp.eq.s32.totalorder %s21, 1
      %p159 = scmp.ne.s32.totalorder %s154, %s156
      %p160 = scmp.eq.s32.totalorder %s21, 0
      %p161 = por %p159, %p160
      %p162 = scmp.ne.s32.totalorder %s154, %s156
      %p163 = scmp.eq.s32.totalorder %s26, 1
      %p164 = por %p162, %p163
      %p165 = scmp.ne.s32.totalorder %s156, %s157
      %p166 = scmp.eq.s32.totalorder %s26, 0
      %p167 = por %p165, %p166
      %p168 = scmp.ne.s32.totalorder %s156, %s157
      %p169 = scmp.eq.s32.totalorder %s27, 1
      %p170 = por %p168, %p169
      %p172 = scmp.ne.s32.totalorder %s157, %s171
      %p173 = scmp.eq.s32.totalorder %s27, 0
      %p174 = por %p172, %p173
      %s176 = sadd.s32 %s175, 1
      %p179 = scmp.eq.s32.totalorder %s21, 1
      %p180 = scmp.ne.s32.totalorder %s175, %s177
      %p181 = scmp.eq.s32.totalorder %s21, 0
      %p182 = por %p180, %p181
      %p183 = scmp.ne.s32.totalorder %s175, %s177
      %p184 = scmp.eq.s32.totalorder %s26, 1
      %p185 = por %p183, %p184
      %p186 = scmp.ne.s32.totalorder %s177, %s178
      %p187 = scmp.eq.s32.totalorder %s26, 0
      %p188 = por %p186, %p187
      %p189 = scmp.ne.s32.totalorder %s177, %s178
      %p190 = scmp.eq.s32.totalorder %s27, 1
      %p191 = por %p189, %p190
      %p193 = scmp.ne.s32.totalorder %s178, %s192
      %p194 = scmp.eq.s32.totalorder %s27, 0
      %p195 = por %p193, %p194
      %s197 = sadd.s32 %s196, 1
      %p200 = scmp.eq.s32.totalorder %s21, 1
      %p201 = scmp.ne.s32.totalorder %s196, %s198
      %p202 = scmp.eq.s32.totalorder %s21, 0
      %p203 = por %p201, %p202
      %p204 = scmp.ne.s32.totalorder %s196, %s198
      %p205 = scmp.eq.s32.totalorder %s26, 1
      %p206 = por %p204, %p205
      %p207 = scmp.ne.s32.totalorder %s198, %s199
      %p208 = scmp.eq.s32.totalorder %s26, 0
      %p209 = por %p207, %p208
      %p210 = scmp.ne.s32.totalorder %s198, %s199
      %p211 = scmp.eq.s32.totalorder %s27, 1
      %p212 = por %p210, %p211
      %p214 = scmp.ne.s32.totalorder %s199, %s213
      %p215 = scmp.eq.s32.totalorder %s27, 0
      %p216 = por %p214, %p215
      %s218 = sadd.s32 %s217, 1
      %p221 = scmp.eq.s32.totalorder %s21, 1
      %p222 = scmp.ne.s32.totalorder %s217, %s219
      %p223 = scmp.eq.s32.totalorder %s21, 0
      %p224 = por %p222, %p223
      %p225 = scmp.ne.s32.totalorder %s217, %s219
      %p226 = scmp.eq.s32.totalorder %s26, 1
      %p227 = por %p225, %p226
      %p228 = scmp.ne.s32.totalorder %s219, %s220
      %p229 = scmp.eq.s32.totalorder %s26, 0
      %p230 = por %p228, %p229
      %p231 = scmp.ne.s32.totalorder %s219, %s220
      %p232 = scmp.eq.s32.totalorder %s27, 1
      %p233 = por %p231, %p232
      %p235 = scmp.ne.s32.totalorder %s220, %s234
      %p236 = scmp.eq.s32.totalorder %s27, 0
      %p237 = por %p235, %p236
      %s239 = sadd.s32 %s238, 1
      %p242 = scmp.eq.s32.totalorder %s21, 1
      %p243 = scmp.ne.s32.totalorder %s238, %s240
      %p244 = scmp.eq.s32.totalorder %s21, 0
      %p245 = por %p243, %p244
      %p246 = scmp.ne.s32.totalorder %s238, %s240
      %p247 = scmp.eq.s32.totalorder %s26, 1
      %p248 = por %p246, %p247
      %p249 = scmp.ne.s32.totalorder %s240, %s241
      %p250 = scmp.eq.s32.totalorder %s26, 0
      %p251 = por %p249, %p250
      %p252 = scmp.ne.s32.totalorder %s240, %s241
      %p253 = scmp.eq.s32.totalorder %s27, 1
      %p254 = por %p252, %p253
      %p256 = scmp.ne.s32.totalorder %s241, %s255
      %p257 = scmp.eq.s32.totalorder %s27, 0
      %p258 = por %p256, %p257
      %s260 = sadd.s32 %s259, 1
      %p263 = scmp.eq.s32.totalorder %s21, 1
      %p264 = scmp.ne.s32.totalorder %s259, %s261
      %p265 = scmp.eq.s32.totalorder %s21, 0
      %p266 = por %p264, %p265
      %p267 = scmp.ne.s32.totalorder %s259, %s261
      %p268 = scmp.eq.s32.totalorder %s26, 1
      %p269 = por %p267, %p268
      %p270 = scmp.ne.s32.totalorder %s261, %s262
      %p271 = scmp.eq.s32.totalorder %s26, 0
      %p272 = por %p270, %p271
      %p273 = scmp.ne.s32.totalorder %s261, %s262
      %p274 = scmp.eq.s32.totalorder %s27, 1
      %p275 = por %p273, %p274
      %p277 = scmp.ne.s32.totalorder %s262, %s276
      %p278 = scmp.eq.s32.totalorder %s27, 0
      %p279 = por %p277, %p278
      %s280 = ssub.s32 %s21, %s28
      %p281 = scmp.eq.s32.totalorder %s280, 0
      %s283 = sadd.s32 %s282, 1
      %s284 = scalar_select %p281, %s282, %s283
      %p287 = pneg %p281
      %p288 = scmp.eq.s32.totalorder %s21, 1
      %p289 = por %p287, %p288
      %p290 = scmp.ne.s32.totalorder %s282, %s285
      %p291 = scmp.eq.s32.totalorder %s21, 0
      %p292 = por %p290, %p291
      %p293 = scmp.ne.s32.totalorder %s282, %s285
      %p294 = scmp.eq.s32.totalorder %s26, 1
      %p295 = por %p293, %p294
      %p296 = scmp.ne.s32.totalorder %s285, %s286
      %p297 = scmp.eq.s32.totalorder %s26, 0
      %p298 = por %p296, %p297
      %p299 = scmp.ne.s32.totalorder %s285, %s286
      %p300 = scmp.eq.s32.totalorder %s27, 1
      %p301 = por %p299, %p300
      %p303 = scmp.ne.s32.totalorder %s286, %s302
      %p304 = scmp.eq.s32.totalorder %s27, 0
      %p305 = por %p303, %p304
      %p306 = scmp.le.s32.totalorder 1, %s21
      %p307 = scmp.lt.s32.totalorder %s21, 3
      %p308 = pnand %p306, %p307
      %p309 = pneg %p308
      // Predicated region
      $region9: #{tpu_custom_call.1} parent=5 // pred_check
        _
      $region10: #{tpu_custom_call.1} parent=5 // pred_check_branch
        %311 = sbr.rel (%p308) target = $region12
      $region11: #{tpu_custom_call.1} parent=5 // pred_region
        %s312 = ssub.s32 %s21, 1
        // Predicated region
        $region13: #{tpu_custom_call.1} parent=11 // pred_check
          %p313 = pneg %p146
        $region14: #{tpu_custom_call.1} parent=11 // pred_check_branch
          %315 = sbr.rel (%p313) target = $region16
        $region15: #{tpu_custom_call.1} parent=11 // pred_region
          _
        $region16: #{tpu_custom_call.1} parent=11 // pred_fallthru
          _
        // Predicated region
        $region17: #{tpu_custom_call.1} parent=11 // pred_check
          %p316 = pneg %p167
        $region18: #{tpu_custom_call.1} parent=11 // pred_check_branch
          %318 = sbr.rel (%p316) target = $region20
        $region19: #{tpu_custom_call.1} parent=11 // pred_region
          _
        $region20: #{tpu_custom_call.1} parent=11 // pred_fallthru
          _
        // Predicated region
        $region21: #{tpu_custom_call.1} parent=11 // pred_check
          %p319 = pneg %p188
        $region22: #{tpu_custom_call.1} parent=11 // pred_check_branch
          %321 = sbr.rel (%p319) target = $region24
        $region23: #{tpu_custom_call.1} parent=11 // pred_region
          _
        $region24: #{tpu_custom_call.1} parent=11 // pred_fallthru
          _
        // Predicated region
        $region25: #{tpu_custom_call.1} parent=11 // pred_check
          %p322 = pneg %p209
        $region26: #{tpu_custom_call.1} parent=11 // pred_check_branch
          %324 = sbr.rel (%p322) target = $region28
        $region27: #{tpu_custom_call.1} parent=11 // pred_region
          _
        $region28: #{tpu_custom_call.1} parent=11 // pred_fallthru
          _
        // Predicated region
        $region29: #{tpu_custom_call.1} parent=11 // pred_check
          %p325 = pneg %p230
        $region30: #{tpu_custom_call.1} parent=11 // pred_check_branch
          %327 = sbr.rel (%p325) target = $region32
        $region31: #{tpu_custom_call.1} parent=11 // pred_region
          _
        $region32: #{tpu_custom_call.1} parent=11 // pred_fallthru
          _
        // Predicated region
        $region33: #{tpu_custom_call.1} parent=11 // pred_check
          %p328 = pneg %p251
        $region34: #{tpu_custom_call.1} parent=11 // pred_check_branch
          %330 = sbr.rel (%p328) target = $region36
        $region35: #{tpu_custom_call.1} parent=11 // pred_region
          _
        $region36: #{tpu_custom_call.1} parent=11 // pred_fallthru
          _
        // Predicated region
        $region37: #{tpu_custom_call.1} parent=11 // pred_check
          %p331 = pneg %p272
        $region38: #{tpu_custom_call.1} parent=11 // pred_check_branch
          %333 = sbr.rel (%p331) target = $region40
        $region39: #{tpu_custom_call.1} parent=11 // pred_region
          _
        $region40: #{tpu_custom_call.1} parent=11 // pred_fallthru
          _
      $region12: #{tpu_custom_call.1} parent=5 // pred_fallthru
        _
      %p334 = scmp.lt.s32.totalorder %s21, 2
      // Predicated region
      $region41: #{tpu_custom_call.1} parent=5 // pred_check
        %p335 = pneg %p334
      $region42: #{tpu_custom_call.1} parent=5 // pred_check_branch
        %337 = sbr.rel (%p335) target = $region44
      $region43: #{tpu_custom_call.1} parent=5 // pred_region
        // Predicated region
        $region45: #{tpu_custom_call.1} parent=43 // pred_check
          %p338 = pneg %p41
        $region46: #{tpu_custom_call.1} parent=43 // pred_check_branch
          %340 = sbr.rel (%p338) target = $region48
        $region47: #{tpu_custom_call.1} parent=43 // pred_region
          %s341 = smul.u32 64, %s21
          %p342 = scmp.lt.s32.totalorder %s341, 127
          %s343 = scalar_select %p342, %s341, 127
          %s344 = smul.addr %s343, 8
          %s345 = scalar_lea.vmem %s0, %s344
          %s346 = smul.u32 64, %s21
        $region48: #{tpu_custom_call.1} parent=43 // pred_fallthru
          _
        // Predicated region
        $region49: #{tpu_custom_call.1} parent=43 // pred_check
          %p347 = pneg %p67
        $region50: #{tpu_custom_call.1} parent=43 // pred_check_branch
          %349 = sbr.rel (%p347) target = $region52
        $region51: #{tpu_custom_call.1} parent=43 // pred_region
          %s350 = smul.u32 64, %s21
          %p351 = scmp.lt.s32.totalorder %s350, 127
          %s352 = scalar_select %p351, %s350, 127
          %s353 = smul.addr %s352, 8
          %s354 = scalar_lea.vmem %s1, %s353
          %s355 = smul.u32 64, %s21
        $region52: #{tpu_custom_call.1} parent=43 // pred_fallthru
          _
        // Predicated region
        $region53: #{tpu_custom_call.1} parent=43 // pred_check
          %p356 = pneg %p93
        $region54: #{tpu_custom_call.1} parent=43 // pred_check_branch
          %358 = sbr.rel (%p356) target = $region56
        $region55: #{tpu_custom_call.1} parent=43 // pred_region
          %s359 = smul.u32 64, %s21
          %p360 = scmp.lt.s32.totalorder %s359, 127
          %s361 = scalar_select %p360, %s359, 127
          %s362 = smul.addr %s361, 8
          %s363 = scalar_lea.vmem %s2, %s362
          %s364 = smul.u32 64, %s21
        $region56: #{tpu_custom_call.1} parent=43 // pred_fallthru
          _
        // Predicated region
        $region57: #{tpu_custom_call.1} parent=43 // pred_check
          %p365 = pneg %p119
        $region58: #{tpu_custom_call.1} parent=43 // pred_check_branch
          %367 = sbr.rel (%p365) target = $region60
        $region59: #{tpu_custom_call.1} parent=43 // pred_region
          %s368 = smul.u32 64, %s21
          %p369 = scmp.lt.s32.totalorder %s368, 127
          %s370 = scalar_select %p369, %s368, 127
          %s371 = smul.addr %s370, 8
          %s372 = scalar_lea.vmem %s3, %s371
          %s373 = smul.u32 64, %s21
        $region60: #{tpu_custom_call.1} parent=43 // pred_fallthru
          _
      $region44: #{tpu_custom_call.1} parent=5 // pred_fallthru
        _
      %p374 = scmp.le.s32.totalorder 1, %s21
      %p375 = scmp.lt.s32.totalorder %s21, 3
      %p376 = pnand %p374, %p375
      %p377 = pneg %p376
      // Predicated region
      $region61: #{tpu_custom_call.1} parent=5 // pred_check
        _
      $region62: #{tpu_custom_call.1} parent=5 // pred_check_branch
        %379 = sbr.rel (%p376) target = $region64
      $region63: #{tpu_custom_call.1} parent=5 // pred_region
        %s380 = ssub.s32 %s21, 1
        %s381 = smul.u32 64, %s26
        %p382 = scmp.lt.s32.totalorder %s381, 127
        %s383 = scalar_select %p382, %s381, 127
        %s384 = smul.addr %s383, 8
        %s385 = scalar_lea.vmem %s0, %s384
        %p386 = pneg %p47
        %p387 = pneg %p44
        %s388 = smul.u32 64, %s26
        %p389 = scmp.lt.s32.totalorder %s388, 127
        %s390 = scalar_select %p389, %s388, 127
        %s391 = smul.addr %s390, 8
        %s392 = scalar_lea.vmem %s1, %s391
        %p393 = pneg %p73
        %p394 = pneg %p70
        %s395 = smul.u32 64, %s26
        %p396 = scmp.lt.s32.totalorder %s395, 127
        %s397 = scalar_select %p396, %s395, 127
        %s398 = smul.addr %s397, 8
        %s399 = scalar_lea.vmem %s2, %s398
        %p400 = pneg %p99
        %p401 = pneg %p96
        %s402 = smul.u32 64, %s26
        %p403 = scmp.lt.s32.totalorder %s402, 127
        %s404 = scalar_select %p403, %s402, 127
        %s405 = smul.addr %s404, 8
        %s406 = scalar_lea.vmem %s3, %s405
        %p407 = pneg %p125
        %p408 = pneg %p122
        %p409 = pneg %p146
        %p410 = pneg %p143
        %p411 = pneg %p167
        %p412 = pneg %p164
        %p413 = pneg %p188
        %p414 = pneg %p185
        %p415 = pneg %p209
        %p416 = pneg %p206
        %p417 = pneg %p230
        %p418 = pneg %p227
        %p419 = pneg %p251
        %p420 = pneg %p248
        %p421 = pneg %p272
        %p422 = pneg %p269
        %p423 = pneg %p298
        %p424 = pneg %p295
        %s425 = sand.u32 %s285, 1
        %s426 = scalar_lea.sflag [#allocation4], %s425
        %s427 = sand.u32 %s285, 1
        %s428 = smul.addr %s427, 4
        %s429 = scalar_lea.vmem [#allocation3], %s428
        %s430 = smul.u32 64, %s26
        %p431 = scmp.lt.s32.totalorder %s430, 127
        %s432 = scalar_select %p431, %s430, 127
        %s433 = smul.addr %s432, 8
        %s434 = scalar_lea.vmem %s0, %s433
        %s435 = smul.u32 64, %s26
        %s436 = smul.u32 64, %s26
        %p437 = scmp.lt.s32.totalorder %s436, 127
        %s438 = scalar_select %p437, %s436, 127
        %s439 = smul.addr %s438, 8
        %s440 = scalar_lea.vmem %s1, %s439
        %s441 = smul.u32 64, %s26
        %s442 = smul.u32 64, %s26
        %p443 = scmp.lt.s32.totalorder %s442, 127
        %s444 = scalar_select %p443, %s442, 127
        %s445 = smul.addr %s444, 8
        %s446 = scalar_lea.vmem %s2, %s445
        %s447 = smul.u32 64, %s26
        %s448 = smul.u32 64, %s26
        %p449 = scmp.lt.s32.totalorder %s448, 127
        %s450 = scalar_select %p449, %s448, 127
        %s451 = smul.addr %s450, 8
        %s452 = scalar_lea.vmem %s3, %s451
        %s453 = smul.u32 64, %s26
        %s454 = smul.u32 4, %s26
        %v455 = vld [vmem:[%s434] sm:$0xff]
        %v456 = vld [vmem:[%s434 + $0x8] sm:$0xff]
        %v457 = vld [vmem:[%s434 + $0x10] sm:$0xff]
        %v458 = vld [vmem:[%s434 + $0x18] sm:$0xff]
        %v459 = vld [vmem:[%s434 + $0x20] sm:$0xff]
        %v460 = vld [vmem:[%s434 + $0x28] sm:$0xff]
        %v461 = vld [vmem:[%s434 + $0x30] sm:$0xff]
        %v462 = vld [vmem:[%s434 + $0x38] sm:$0xff]
        %v463 = vld [vmem:[%s434 + $0x40] sm:$0xff]
        %v464 = vld [vmem:[%s434 + $0x48] sm:$0xff]
        %v465 = vld [vmem:[%s434 + $0x50] sm:$0xff]
        %v466 = vld [vmem:[%s434 + $0x58] sm:$0xff]
        %v467 = vld [vmem:[%s434 + $0x60] sm:$0xff]
        %v468 = vld [vmem:[%s434 + $0x68] sm:$0xff]
        %v469 = vld [vmem:[%s434 + $0x70] sm:$0xff]
        %v470 = vld [vmem:[%s434 + $0x78] sm:$0xff]
        %v471 = vld [vmem:[%s434 + $0x80] sm:$0xff]
        %v472 = vld [vmem:[%s434 + $0x88] sm:$0xff]
        %v473 = vld [vmem:[%s434 + $0x90] sm:$0xff]
        %v474 = vld [vmem:[%s434 + $0x98] sm:$0xff]
        %v475 = vld [vmem:[%s434 + $0xa0] sm:$0xff]
        %v476 = vld [vmem:[%s434 + $0xa8] sm:$0xff]
        %v477 = vld [vmem:[%s434 + $0xb0] sm:$0xff]
        %v478 = vld [vmem:[%s434 + $0xb8] sm:$0xff]
        %v479 = vld [vmem:[%s434 + $0xc0] sm:$0xff]
        %v480 = vld [vmem:[%s434 + $0xc8] sm:$0xff]
        %v481 = vld [vmem:[%s434 + $0xd0] sm:$0xff]
        %v482 = vld [vmem:[%s434 + $0xd8] sm:$0xff]
        %v483 = vld [vmem:[%s434 + $0xe0] sm:$0xff]
        %v484 = vld [vmem:[%s434 + $0xe8] sm:$0xff]
        %v485 = vld [vmem:[%s434 + $0xf0] sm:$0xff]
        %v486 = vld [vmem:[%s434 + $0xf8] sm:$0xff]
        %v487 = vld [vmem:[%s434 + $0x100] sm:$0xff]
        %v488 = vld [vmem:[%s434 + $0x108] sm:$0xff]
        %v489 = vld [vmem:[%s434 + $0x110] sm:$0xff]
        %v490 = vld [vmem:[%s434 + $0x118] sm:$0xff]
        %v491 = vld [vmem:[%s434 + $0x120] sm:$0xff]
        %v492 = vld [vmem:[%s434 + $0x128] sm:$0xff]
        %v493 = vld [vmem:[%s434 + $0x130] sm:$0xff]
        %v494 = vld [vmem:[%s434 + $0x138] sm:$0xff]
        %v495 = vld [vmem:[%s434 + $0x140] sm:$0xff]
        %v496 = vld [vmem:[%s434 + $0x148] sm:$0xff]
        %v497 = vld [vmem:[%s434 + $0x150] sm:$0xff]
        %v498 = vld [vmem:[%s434 + $0x158] sm:$0xff]
        %v499 = vld [vmem:[%s434 + $0x160] sm:$0xff]
        %v500 = vld [vmem:[%s434 + $0x168] sm:$0xff]
        %v501 = vld [vmem:[%s434 + $0x170] sm:$0xff]
        %v502 = vld [vmem:[%s434 + $0x178] sm:$0xff]
        %v503 = vld [vmem:[%s434 + $0x180] sm:$0xff]
        %v504 = vld [vmem:[%s434 + $0x188] sm:$0xff]
        %v505 = vld [vmem:[%s434 + $0x190] sm:$0xff]
        %v506 = vld [vmem:[%s434 + $0x198] sm:$0xff]
        %v507 = vld [vmem:[%s434 + $0x1a0] sm:$0xff]
        %v508 = vld [vmem:[%s434 + $0x1a8] sm:$0xff]
        %v509 = vld [vmem:[%s434 + $0x1b0] sm:$0xff]
        %v510 = vld [vmem:[%s434 + $0x1b8] sm:$0xff]
        %v511 = vld [vmem:[%s434 + $0x1c0] sm:$0xff]
        %v512 = vld [vmem:[%s434 + $0x1c8] sm:$0xff]
        %v513 = vld [vmem:[%s434 + $0x1d0] sm:$0xff]
        %v514 = vld [vmem:[%s434 + $0x1d8] sm:$0xff]
        %v515 = vld [vmem:[%s434 + $0x1e0] sm:$0xff]
        %v516 = vld [vmem:[%s434 + $0x1e8] sm:$0xff]
        %v517 = vld [vmem:[%s434 + $0x1f0] sm:$0xff]
        %v518 = vld [vmem:[%s434 + $0x1f8] sm:$0xff]
        %v519 = vld [vmem:[%s440] sm:$0xff]
        %v520 = vld [vmem:[%s440 + $0x8] sm:$0xff]
        %v521 = vld [vmem:[%s440 + $0x10] sm:$0xff]
        %v522 = vld [vmem:[%s440 + $0x18] sm:$0xff]
        %v523 = vld [vmem:[%s440 + $0x20] sm:$0xff]
        %v524 = vld [vmem:[%s440 + $0x28] sm:$0xff]
        %v525 = vld [vmem:[%s440 + $0x30] sm:$0xff]
        %v526 = vld [vmem:[%s440 + $0x38] sm:$0xff]
        %v527 = vld [vmem:[%s440 + $0x40] sm:$0xff]
        %v528 = vld [vmem:[%s440 + $0x48] sm:$0xff]
        %v529 = vld [vmem:[%s440 + $0x50] sm:$0xff]
        %v530 = vld [vmem:[%s440 + $0x58] sm:$0xff]
        %v531 = vld [vmem:[%s440 + $0x60] sm:$0xff]
        %v532 = vld [vmem:[%s440 + $0x68] sm:$0xff]
        %v533 = vld [vmem:[%s440 + $0x70] sm:$0xff]
        %v534 = vld [vmem:[%s440 + $0x78] sm:$0xff]
        %v535 = vld [vmem:[%s440 + $0x80] sm:$0xff]
        %v536 = vld [vmem:[%s440 + $0x88] sm:$0xff]
        %v537 = vld [vmem:[%s440 + $0x90] sm:$0xff]
        %v538 = vld [vmem:[%s440 + $0x98] sm:$0xff]
        %v539 = vld [vmem:[%s440 + $0xa0] sm:$0xff]
        %v540 = vld [vmem:[%s440 + $0xa8] sm:$0xff]
        %v541 = vld [vmem:[%s440 + $0xb0] sm:$0xff]
        %v542 = vld [vmem:[%s440 + $0xb8] sm:$0xff]
        %v543 = vld [vmem:[%s440 + $0xc0] sm:$0xff]
        %v544 = vld [vmem:[%s440 + $0xc8] sm:$0xff]
        %v545 = vld [vmem:[%s440 + $0xd0] sm:$0xff]
        %v546 = vld [vmem:[%s440 + $0xd8] sm:$0xff]
        %v547 = vld [vmem:[%s440 + $0xe0] sm:$0xff]
        %v548 = vld [vmem:[%s440 + $0xe8] sm:$0xff]
        %v549 = vld [vmem:[%s440 + $0xf0] sm:$0xff]
        %v550 = vld [vmem:[%s440 + $0xf8] sm:$0xff]
        %v551 = vld [vmem:[%s440 + $0x100] sm:$0xff]
        %v552 = vld [vmem:[%s440 + $0x108] sm:$0xff]
        %v553 = vld [vmem:[%s440 + $0x110] sm:$0xff]
        %v554 = vld [vmem:[%s440 + $0x118] sm:$0xff]
        %v555 = vld [vmem:[%s440 + $0x120] sm:$0xff]
        %v556 = vld [vmem:[%s440 + $0x128] sm:$0xff]
        %v557 = vld [vmem:[%s440 + $0x130] sm:$0xff]
        %v558 = vld [vmem:[%s440 + $0x138] sm:$0xff]
        %v559 = vld [vmem:[%s440 + $0x140] sm:$0xff]
        %v560 = vld [vmem:[%s440 + $0x148] sm:$0xff]
        %v561 = vld [vmem:[%s440 + $0x150] sm:$0xff]
        %v562 = vld [vmem:[%s440 + $0x158] sm:$0xff]
        %v563 = vld [vmem:[%s440 + $0x160] sm:$0xff]
        %v564 = vld [vmem:[%s440 + $0x168] sm:$0xff]
        %v565 = vld [vmem:[%s440 + $0x170] sm:$0xff]
        %v566 = vld [vmem:[%s440 + $0x178] sm:$0xff]
        %v567 = vld [vmem:[%s440 + $0x180] sm:$0xff]
        %v568 = vld [vmem:[%s440 + $0x188] sm:$0xff]
        %v569 = vld [vmem:[%s440 + $0x190] sm:$0xff]
        %v570 = vld [vmem:[%s440 + $0x198] sm:$0xff]
        %v571 = vld [vmem:[%s440 + $0x1a0] sm:$0xff]
        %v572 = vld [vmem:[%s440 + $0x1a8] sm:$0xff]
        %v573 = vld [vmem:[%s440 + $0x1b0] sm:$0xff]
        %v574 = vld [vmem:[%s440 + $0x1b8] sm:$0xff]
        %v575 = vld [vmem:[%s440 + $0x1c0] sm:$0xff]
        %v576 = vld [vmem:[%s440 + $0x1c8] sm:$0xff]
        %v577 = vld [vmem:[%s440 + $0x1d0] sm:$0xff]
        %v578 = vld [vmem:[%s440 + $0x1d8] sm:$0xff]
        %v579 = vld [vmem:[%s440 + $0x1e0] sm:$0xff]
        %v580 = vld [vmem:[%s440 + $0x1e8] sm:$0xff]
        %v581 = vld [vmem:[%s440 + $0x1f0] sm:$0xff]
        %v582 = vld [vmem:[%s440 + $0x1f8] sm:$0xff]
        %v583 = vmul.f32 %v455, %v519
        %v584 = vmul.f32 %v456, %v520
        %v585 = vmul.f32 %v457, %v521
        %v586 = vmul.f32 %v458, %v522
        %v587 = vmul.f32 %v459, %v523
        %v588 = vmul.f32 %v460, %v524
        %v589 = vmul.f32 %v461, %v525
        %v590 = vmul.f32 %v462, %v526
        %v591 = vmul.f32 %v463, %v527
        %v592 = vmul.f32 %v464, %v528
        %v593 = vmul.f32 %v465, %v529
        %v594 = vmul.f32 %v466, %v530
        %v595 = vmul.f32 %v467, %v531
        %v596 = vmul.f32 %v468, %v532
        %v597 = vmul.f32 %v469, %v533
        %v598 = vmul.f32 %v470, %v534
        %v599 = vmul.f32 %v471, %v535
        %v600 = vmul.f32 %v472, %v536
        %v601 = vmul.f32 %v473, %v537
        %v602 = vmul.f32 %v474, %v538
        %v603 = vmul.f32 %v475, %v539
        %v604 = vmul.f32 %v476, %v540
        %v605 = vmul.f32 %v477, %v541
        %v606 = vmul.f32 %v478, %v542
        %v607 = vmul.f32 %v479, %v543
        %v608 = vmul.f32 %v480, %v544
        %v609 = vmul.f32 %v481, %v545
        %v610 = vmul.f32 %v482, %v546
        %v611 = vmul.f32 %v483, %v547
        %v612 = vmul.f32 %v484, %v548
        %v613 = vmul.f32 %v485, %v549
        %v614 = vmul.f32 %v486, %v550
        %v615 = vmul.f32 %v487, %v551
        %v616 = vmul.f32 %v488, %v552
        %v617 = vmul.f32 %v489, %v553
        %v618 = vmul.f32 %v490, %v554
        %v619 = vmul.f32 %v491, %v555
        %v620 = vmul.f32 %v492, %v556
        %v621 = vmul.f32 %v493, %v557
        %v622 = vmul.f32 %v494, %v558
        %v623 = vmul.f32 %v495, %v559
        %v624 = vmul.f32 %v496, %v560
        %v625 = vmul.f32 %v497, %v561
        %v626 = vmul.f32 %v498, %v562
        %v627 = vmul.f32 %v499, %v563
        %v628 = vmul.f32 %v500, %v564
        %v629 = vmul.f32 %v501, %v565
        %v630 = vmul.f32 %v502, %v566
        %v631 = vmul.f32 %v503, %v567
        %v632 = vmul.f32 %v504, %v568
        %v633 = vmul.f32 %v505, %v569
        %v634 = vmul.f32 %v506, %v570
        %v635 = vmul.f32 %v507, %v571
        %v636 = vmul.f32 %v508, %v572
        %v637 = vmul.f32 %v509, %v573
        %v638 = vmul.f32 %v510, %v574
        %v639 = vmul.f32 %v511, %v575
        %v640 = vmul.f32 %v512, %v576
        %v641 = vmul.f32 %v513, %v577
        %v642 = vmul.f32 %v514, %v578
        %v643 = vmul.f32 %v515, %v579
        %v644 = vmul.f32 %v516, %v580
        %v645 = vmul.f32 %v517, %v581
        %v646 = vmul.f32 %v518, %v582
        %v647 = vld [vmem:[%s446] sm:$0xff]
        %v648 = vld [vmem:[%s446 + $0x8] sm:$0xff]
        %v649 = vld [vmem:[%s446 + $0x10] sm:$0xff]
        %v650 = vld [vmem:[%s446 + $0x18] sm:$0xff]
        %v651 = vld [vmem:[%s446 + $0x20] sm:$0xff]
        %v652 = vld [vmem:[%s446 + $0x28] sm:$0xff]
        %v653 = vld [vmem:[%s446 + $0x30] sm:$0xff]
        %v654 = vld [vmem:[%s446 + $0x38] sm:$0xff]
        %v655 = vld [vmem:[%s446 + $0x40] sm:$0xff]
        %v656 = vld [vmem:[%s446 + $0x48] sm:$0xff]
        %v657 = vld [vmem:[%s446 + $0x50] sm:$0xff]
        %v658 = vld [vmem:[%s446 + $0x58] sm:$0xff]
        %v659 = vld [vmem:[%s446 + $0x60] sm:$0xff]
        %v660 = vld [vmem:[%s446 + $0x68] sm:$0xff]
        %v661 = vld [vmem:[%s446 + $0x70] sm:$0xff]
        %v662 = vld [vmem:[%s446 + $0x78] sm:$0xff]
        %v663 = vld [vmem:[%s446 + $0x80] sm:$0xff]
        %v664 = vld [vmem:[%s446 + $0x88] sm:$0xff]
        %v665 = vld [vmem:[%s446 + $0x90] sm:$0xff]
        %v666 = vld [vmem:[%s446 + $0x98] sm:$0xff]
        %v667 = vld [vmem:[%s446 + $0xa0] sm:$0xff]
        %v668 = vld [vmem:[%s446 + $0xa8] sm:$0xff]
        %v669 = vld [vmem:[%s446 + $0xb0] sm:$0xff]
        %v670 = vld [vmem:[%s446 + $0xb8] sm:$0xff]
        %v671 = vld [vmem:[%s446 + $0xc0] sm:$0xff]
        %v672 = vld [vmem:[%s446 + $0xc8] sm:$0xff]
        %v673 = vld [vmem:[%s446 + $0xd0] sm:$0xff]
        %v674 = vld [vmem:[%s446 + $0xd8] sm:$0xff]
        %v675 = vld [vmem:[%s446 + $0xe0] sm:$0xff]
        %v676 = vld [vmem:[%s446 + $0xe8] sm:$0xff]
        %v677 = vld [vmem:[%s446 + $0xf0] sm:$0xff]
        %v678 = vld [vmem:[%s446 + $0xf8] sm:$0xff]
        %v679 = vld [vmem:[%s446 + $0x100] sm:$0xff]
        %v680 = vld [vmem:[%s446 + $0x108] sm:$0xff]
        %v681 = vld [vmem:[%s446 + $0x110] sm:$0xff]
        %v682 = vld [vmem:[%s446 + $0x118] sm:$0xff]
        %v683 = vld [vmem:[%s446 + $0x120] sm:$0xff]
        %v684 = vld [vmem:[%s446 + $0x128] sm:$0xff]
        %v685 = vld [vmem:[%s446 + $0x130] sm:$0xff]
        %v686 = vld [vmem:[%s446 + $0x138] sm:$0xff]
        %v687 = vld [vmem:[%s446 + $0x140] sm:$0xff]
        %v688 = vld [vmem:[%s446 + $0x148] sm:$0xff]
        %v689 = vld [vmem:[%s446 + $0x150] sm:$0xff]
        %v690 = vld [vmem:[%s446 + $0x158] sm:$0xff]
        %v691 = vld [vmem:[%s446 + $0x160] sm:$0xff]
        %v692 = vld [vmem:[%s446 + $0x168] sm:$0xff]
        %v693 = vld [vmem:[%s446 + $0x170] sm:$0xff]
        %v694 = vld [vmem:[%s446 + $0x178] sm:$0xff]
        %v695 = vld [vmem:[%s446 + $0x180] sm:$0xff]
        %v696 = vld [vmem:[%s446 + $0x188] sm:$0xff]
        %v697 = vld [vmem:[%s446 + $0x190] sm:$0xff]
        %v698 = vld [vmem:[%s446 + $0x198] sm:$0xff]
        %v699 = vld [vmem:[%s446 + $0x1a0] sm:$0xff]
        %v700 = vld [vmem:[%s446 + $0x1a8] sm:$0xff]
        %v701 = vld [vmem:[%s446 + $0x1b0] sm:$0xff]
        %v702 = vld [vmem:[%s446 + $0x1b8] sm:$0xff]
        %v703 = vld [vmem:[%s446 + $0x1c0] sm:$0xff]
        %v704 = vld [vmem:[%s446 + $0x1c8] sm:$0xff]
        %v705 = vld [vmem:[%s446 + $0x1d0] sm:$0xff]
        %v706 = vld [vmem:[%s446 + $0x1d8] sm:$0xff]
        %v707 = vld [vmem:[%s446 + $0x1e0] sm:$0xff]
        %v708 = vld [vmem:[%s446 + $0x1e8] sm:$0xff]
        %v709 = vld [vmem:[%s446 + $0x1f0] sm:$0xff]
        %v710 = vld [vmem:[%s446 + $0x1f8] sm:$0xff]
        %v711 = vld [vmem:[%s452] sm:$0xff]
        %v712 = vld [vmem:[%s452 + $0x8] sm:$0xff]
        %v713 = vld [vmem:[%s452 + $0x10] sm:$0xff]
        %v714 = vld [vmem:[%s452 + $0x18] sm:$0xff]
        %v715 = vld [vmem:[%s452 + $0x20] sm:$0xff]
        %v716 = vld [vmem:[%s452 + $0x28] sm:$0xff]
        %v717 = vld [vmem:[%s452 + $0x30] sm:$0xff]
        %v718 = vld [vmem:[%s452 + $0x38] sm:$0xff]
        %v719 = vld [vmem:[%s452 + $0x40] sm:$0xff]
        %v720 = vld [vmem:[%s452 + $0x48] sm:$0xff]
        %v721 = vld [vmem:[%s452 + $0x50] sm:$0xff]
        %v722 = vld [vmem:[%s452 + $0x58] sm:$0xff]
        %v723 = vld [vmem:[%s452 + $0x60] sm:$0xff]
        %v724 = vld [vmem:[%s452 + $0x68] sm:$0xff]
        %v725 = vld [vmem:[%s452 + $0x70] sm:$0xff]
        %v726 = vld [vmem:[%s452 + $0x78] sm:$0xff]
        %v727 = vld [vmem:[%s452 + $0x80] sm:$0xff]
        %v728 = vld [vmem:[%s452 + $0x88] sm:$0xff]
        %v729 = vld [vmem:[%s452 + $0x90] sm:$0xff]
        %v730 = vld [vmem:[%s452 + $0x98] sm:$0xff]
        %v731 = vld [vmem:[%s452 + $0xa0] sm:$0xff]
        %v732 = vld [vmem:[%s452 + $0xa8] sm:$0xff]
        %v733 = vld [vmem:[%s452 + $0xb0] sm:$0xff]
        %v734 = vld [vmem:[%s452 + $0xb8] sm:$0xff]
        %v735 = vld [vmem:[%s452 + $0xc0] sm:$0xff]
        %v736 = vld [vmem:[%s452 + $0xc8] sm:$0xff]
        %v737 = vld [vmem:[%s452 + $0xd0] sm:$0xff]
        %v738 = vld [vmem:[%s452 + $0xd8] sm:$0xff]
        %v739 = vld [vmem:[%s452 + $0xe0] sm:$0xff]
        %v740 = vld [vmem:[%s452 + $0xe8] sm:$0xff]
        %v741 = vld [vmem:[%s452 + $0xf0] sm:$0xff]
        %v742 = vld [vmem:[%s452 + $0xf8] sm:$0xff]
        %v743 = vld [vmem:[%s452 + $0x100] sm:$0xff]
        %v744 = vld [vmem:[%s452 + $0x108] sm:$0xff]
        %v745 = vld [vmem:[%s452 + $0x110] sm:$0xff]
        %v746 = vld [vmem:[%s452 + $0x118] sm:$0xff]
        %v747 = vld [vmem:[%s452 + $0x120] sm:$0xff]
        %v748 = vld [vmem:[%s452 + $0x128] sm:$0xff]
        %v749 = vld [vmem:[%s452 + $0x130] sm:$0xff]
        %v750 = vld [vmem:[%s452 + $0x138] sm:$0xff]
        %v751 = vld [vmem:[%s452 + $0x140] sm:$0xff]
        %v752 = vld [vmem:[%s452 + $0x148] sm:$0xff]
        %v753 = vld [vmem:[%s452 + $0x150] sm:$0xff]
        %v754 = vld [vmem:[%s452 + $0x158] sm:$0xff]
        %v755 = vld [vmem:[%s452 + $0x160] sm:$0xff]
        %v756 = vld [vmem:[%s452 + $0x168] sm:$0xff]
        %v757 = vld [vmem:[%s452 + $0x170] sm:$0xff]
        %v758 = vld [vmem:[%s452 + $0x178] sm:$0xff]
        %v759 = vld [vmem:[%s452 + $0x180] sm:$0xff]
        %v760 = vld [vmem:[%s452 + $0x188] sm:$0xff]
        %v761 = vld [vmem:[%s452 + $0x190] sm:$0xff]
        %v762 = vld [vmem:[%s452 + $0x198] sm:$0xff]
        %v763 = vld [vmem:[%s452 + $0x1a0] sm:$0xff]
        %v764 = vld [vmem:[%s452 + $0x1a8] sm:$0xff]
        %v765 = vld [vmem:[%s452 + $0x1b0] sm:$0xff]
        %v766 = vld [vmem:[%s452 + $0x1b8] sm:$0xff]
        %v767 = vld [vmem:[%s452 + $0x1c0] sm:$0xff]
        %v768 = vld [vmem:[%s452 + $0x1c8] sm:$0xff]
        %v769 = vld [vmem:[%s452 + $0x1d0] sm:$0xff]
        %v770 = vld [vmem:[%s452 + $0x1d8] sm:$0xff]
        %v771 = vld [vmem:[%s452 + $0x1e0] sm:$0xff]
        %v772 = vld [vmem:[%s452 + $0x1e8] sm:$0xff]
        %v773 = vld [vmem:[%s452 + $0x1f0] sm:$0xff]
        %v774 = vld [vmem:[%s452 + $0x1f8] sm:$0xff]
        %v775 = vsub.f32 %v647, %v711
        %v776 = vsub.f32 %v648, %v712
        %v777 = vsub.f32 %v649, %v713
        %v778 = vsub.f32 %v650, %v714
        %v779 = vsub.f32 %v651, %v715
        %v780 = vsub.f32 %v652, %v716
        %v781 = vsub.f32 %v653, %v717
        %v782 = vsub.f32 %v654, %v718
        %v783 = vsub.f32 %v655, %v719
        %v784 = vsub.f32 %v656, %v720
        %v785 = vsub.f32 %v657, %v721
        %v786 = vsub.f32 %v658, %v722
        %v787 = vsub.f32 %v659, %v723
        %v788 = vsub.f32 %v660, %v724
        %v789 = vsub.f32 %v661, %v725
        %v790 = vsub.f32 %v662, %v726
        %v791 = vsub.f32 %v663, %v727
        %v792 = vsub.f32 %v664, %v728
        %v793 = vsub.f32 %v665, %v729
        %v794 = vsub.f32 %v666, %v730
        %v795 = vsub.f32 %v667, %v731
        %v796 = vsub.f32 %v668, %v732
        %v797 = vsub.f32 %v669, %v733
        %v798 = vsub.f32 %v670, %v734
        %v799 = vsub.f32 %v671, %v735
        %v800 = vsub.f32 %v672, %v736
        %v801 = vsub.f32 %v673, %v737
        %v802 = vsub.f32 %v674, %v738
        %v803 = vsub.f32 %v675, %v739
        %v804 = vsub.f32 %v676, %v740
        %v805 = vsub.f32 %v677, %v741
        %v806 = vsub.f32 %v678, %v742
        %v807 = vsub.f32 %v679, %v743
        %v808 = vsub.f32 %v680, %v744
        %v809 = vsub.f32 %v681, %v745
        %v810 = vsub.f32 %v682, %v746
        %v811 = vsub.f32 %v683, %v747
        %v812 = vsub.f32 %v684, %v748
        %v813 = vsub.f32 %v685, %v749
        %v814 = vsub.f32 %v686, %v750
        %v815 = vsub.f32 %v687, %v751
        %v816 = vsub.f32 %v688, %v752
        %v817 = vsub.f32 %v689, %v753
        %v818 = vsub.f32 %v690, %v754
        %v819 = vsub.f32 %v691, %v755
        %v820 = vsub.f32 %v692, %v756
        %v821 = vsub.f32 %v693, %v757
        %v822 = vsub.f32 %v694, %v758
        %v823 = vsub.f32 %v695, %v759
        %v824 = vsub.f32 %v696, %v760
        %v825 = vsub.f32 %v697, %v761
        %v826 = vsub.f32 %v698, %v762
        %v827 = vsub.f32 %v699, %v763
        %v828 = vsub.f32 %v700, %v764
        %v829 = vsub.f32 %v701, %v765
        %v830 = vsub.f32 %v702, %v766
        %v831 = vsub.f32 %v703, %v767
        %v832 = vsub.f32 %v704, %v768
        %v833 = vsub.f32 %v705, %v769
        %v834 = vsub.f32 %v706, %v770
        %v835 = vsub.f32 %v707, %v771
        %v836 = vsub.f32 %v708, %v772
        %v837 = vsub.f32 %v709, %v773
        %v838 = vsub.f32 %v710, %v774
        %v839 = vmul.f32 %v775, %v775
        %v840 = vmul.f32 %v776, %v776
        %v841 = vmul.f32 %v777, %v777
        %v842 = vmul.f32 %v778, %v778
        %v843 = vmul.f32 %v779, %v779
        %v844 = vmul.f32 %v780, %v780
        %v845 = vmul.f32 %v781, %v781
        %v846 = vmul.f32 %v782, %v782
        %v847 = vmul.f32 %v783, %v783
        %v848 = vmul.f32 %v784, %v784
        %v849 = vmul.f32 %v785, %v785
        %v850 = vmul.f32 %v786, %v786
        %v851 = vmul.f32 %v787, %v787
        %v852 = vmul.f32 %v788, %v788
        %v853 = vmul.f32 %v789, %v789
        %v854 = vmul.f32 %v790, %v790
        %v855 = vmul.f32 %v791, %v791
        %v856 = vmul.f32 %v792, %v792
        %v857 = vmul.f32 %v793, %v793
        %v858 = vmul.f32 %v794, %v794
        %v859 = vmul.f32 %v795, %v795
        %v860 = vmul.f32 %v796, %v796
        %v861 = vmul.f32 %v797, %v797
        %v862 = vmul.f32 %v798, %v798
        %v863 = vmul.f32 %v799, %v799
        %v864 = vmul.f32 %v800, %v800
        %v865 = vmul.f32 %v801, %v801
        %v866 = vmul.f32 %v802, %v802
        %v867 = vmul.f32 %v803, %v803
        %v868 = vmul.f32 %v804, %v804
        %v869 = vmul.f32 %v805, %v805
        %v870 = vmul.f32 %v806, %v806
        %v871 = vmul.f32 %v807, %v807
        %v872 = vmul.f32 %v808, %v808
        %v873 = vmul.f32 %v809, %v809
        %v874 = vmul.f32 %v810, %v810
        %v875 = vmul.f32 %v811, %v811
        %v876 = vmul.f32 %v812, %v812
        %v877 = vmul.f32 %v813, %v813
        %v878 = vmul.f32 %v814, %v814
        %v879 = vmul.f32 %v815, %v815
        %v880 = vmul.f32 %v816, %v816
        %v881 = vmul.f32 %v817, %v817
        %v882 = vmul.f32 %v818, %v818
        %v883 = vmul.f32 %v819, %v819
        %v884 = vmul.f32 %v820, %v820
        %v885 = vmul.f32 %v821, %v821
        %v886 = vmul.f32 %v822, %v822
        %v887 = vmul.f32 %v823, %v823
        %v888 = vmul.f32 %v824, %v824
        %v889 = vmul.f32 %v825, %v825
        %v890 = vmul.f32 %v826, %v826
        %v891 = vmul.f32 %v827, %v827
        %v892 = vmul.f32 %v828, %v828
        %v893 = vmul.f32 %v829, %v829
        %v894 = vmul.f32 %v830, %v830
        %v895 = vmul.f32 %v831, %v831
        %v896 = vmul.f32 %v832, %v832
        %v897 = vmul.f32 %v833, %v833
        %v898 = vmul.f32 %v834, %v834
        %v899 = vmul.f32 %v835, %v835
        %v900 = vmul.f32 %v836, %v836
        %v901 = vmul.f32 %v837, %v837
        %v902 = vmul.f32 %v838, %v838
        %v903 = vld [vmem:[%s4] sm:$0xff]
        %v904 = vld [vmem:[%s4 + $0x8] sm:$0xff]
        %v905 = vld [vmem:[%s4 + $0x10] sm:$0xff]
        %v906 = vld [vmem:[%s4 + $0x18] sm:$0xff]
        %v907 = vld [vmem:[%s5] sm:$0x1]
        %v909 = vlaneseq
        %v910 = vshrl.u32 %v909, 7
        %v911 = vsub.s32 0, %v910
        %v912 = vrot.slane %v907, %v911
        %vm914 = vcmask 261120
        %v916 = vsel %vm914, %v583, 0
        %v919 = vsel %vm914, %v584, 0
        %v922 = vsel %vm914, %v585, 0
        %v925 = vsel %vm914, %v586, 0
        %v928 = vsel %vm914, %v587, 0
        %v931 = vsel %vm914, %v588, 0
        %v934 = vsel %vm914, %v589, 0
        %v937 = vsel %vm914, %v590, 0
        %v940 = vsel %vm914, %v591, 0
        %v943 = vsel %vm914, %v592, 0
        %v946 = vsel %vm914, %v593, 0
        %v949 = vsel %vm914, %v594, 0
        %v952 = vsel %vm914, %v595, 0
        %v955 = vsel %vm914, %v596, 0
        %v958 = vsel %vm914, %v597, 0
        %v961 = vsel %vm914, %v598, 0
        %v964 = vsel %vm914, %v599, 0
        %v967 = vsel %vm914, %v600, 0
        %v970 = vsel %vm914, %v601, 0
        %v973 = vsel %vm914, %v602, 0
        %v976 = vsel %vm914, %v603, 0
        %v979 = vsel %vm914, %v604, 0
        %v982 = vsel %vm914, %v605, 0
        %v985 = vsel %vm914, %v606, 0
        %v988 = vsel %vm914, %v607, 0
        %v991 = vsel %vm914, %v608, 0
        %v994 = vsel %vm914, %v609, 0
        %v997 = vsel %vm914, %v610, 0
        %v1000 = vsel %vm914, %v611, 0
        %v1003 = vsel %vm914, %v612, 0
        %v1006 = vsel %vm914, %v613, 0
        %v1009 = vsel %vm914, %v614, 0
        %v1012 = vsel %vm914, %v615, 0
        %v1015 = vsel %vm914, %v616, 0
        %v1018 = vsel %vm914, %v617, 0
        %v1021 = vsel %vm914, %v618, 0
        %v1024 = vsel %vm914, %v619, 0
        %v1027 = vsel %vm914, %v620, 0
        %v1030 = vsel %vm914, %v621, 0
        %v1033 = vsel %vm914, %v622, 0
        %v1036 = vsel %vm914, %v623, 0
        %v1039 = vsel %vm914, %v624, 0
        %v1042 = vsel %vm914, %v625, 0
        %v1045 = vsel %vm914, %v626, 0
        %v1048 = vsel %vm914, %v627, 0
        %v1051 = vsel %vm914, %v628, 0
        %v1054 = vsel %vm914, %v629, 0
        %v1057 = vsel %vm914, %v630, 0
        %v1060 = vsel %vm914, %v631, 0
        %v1063 = vsel %vm914, %v632, 0
        %v1066 = vsel %vm914, %v633, 0
        %v1069 = vsel %vm914, %v634, 0
        %v1072 = vsel %vm914, %v635, 0
        %v1075 = vsel %vm914, %v636, 0
        %v1078 = vsel %vm914, %v637, 0
        %v1081 = vsel %vm914, %v638, 0
        %v1084 = vsel %vm914, %v639, 0
        %v1087 = vsel %vm914, %v640, 0
        %v1090 = vsel %vm914, %v641, 0
        %v1093 = vsel %vm914, %v642, 0
        %v1096 = vsel %vm914, %v643, 0
        %v1099 = vsel %vm914, %v644, 0
        %v1102 = vsel %vm914, %v645, 0
        %v1105 = vsel %vm914, %v646, 0
        %1107 = vmatprep.subr.mxu0 0.0
        %1108 = vmatpush1.msra.mxu0 0.0
        %1109 = vmatprep.subr.mxu0 0.0
        %1110 = vmatpush1.msra.mxu0 0.0
        %1111 = vmatprep.subr.mxu0 0.0
        %1112 = vmatpush1.msra.mxu0 0.0
        %1113 = vmatprep.subr.mxu0 0.0
        %1114 = vmatpush1.msra.mxu0 0.0
        %1115 = vmatprep.subr.mxu0 0.0
        %1116 = vmatpush1.msra.mxu0 0.0
        %1117 = vmatprep.subr.mxu0 0.0
        %1118 = vmatpush1.msra.mxu0 0.0
        %1119 = vmatprep.subr.mxu0 0.0
        %1120 = vmatpush1.msra.mxu0 0.0
        %1121 = vmatprep.subr.mxu0 0.0
        %1122 = vmatpush1.msra.mxu0 0.0
        %1123 = vmatprep.subr.mxu0 0.0
        %1124 = vmatpush1.msra.mxu0 0.0
        %1125 = vmatprep.subr.mxu0 0.0
        %1126 = vmatpush1.msra.mxu0 0.0
        %1127 = vmatprep.subr.mxu0 0.0
        %1128 = vmatpush1.msra.mxu0 0.0
        %1129 = vmatprep.subr.mxu0 0.0
        %1130 = vmatpush1.msra.mxu0 0.0
        %1131 = vmatprep.subr.mxu0 0.0
        %1132 = vmatpush1.msra.mxu0 %v906
        %1133 = vmatprep.subr.mxu0 0.0
        %1134 = vmatpush1.msra.mxu0 %v905
        %1135 = vmatprep.subr.mxu0 0.0
        %1136 = vmatpush1.msra.mxu0 %v904
        %1137 = vmatprep.subr.mxu0 0.0
        %1138 = vmatpush1.msra.mxu0 %v903
        %1139 = vmatprep.subr.mxu0 0.0
        %1140 = vmatpush2.msra.mxu0 0.0
        %1141 = vmatprep.subr.mxu0 0.0
        %1142 = vmatpush2.msra.mxu0 0.0
        %1143 = vmatprep.subr.mxu0 0.0
        %1144 = vmatpush2.msra.mxu0 0.0
        %1145 = vmatprep.subr.mxu0 0.0
        %1146 = vmatpush2.msra.mxu0 0.0
        %1147 = vmatprep.subr.mxu0 0.0
        %1148 = vmatpush2.msra.mxu0 0.0
        %1149 = vmatprep.subr.mxu0 0.0
        %1150 = vmatpush2.msra.mxu0 0.0
        %1151 = vmatprep.subr.mxu0 0.0
        %1152 = vmatpush2.msra.mxu0 0.0
        %1153 = vmatprep.subr.mxu0 0.0
        %1154 = vmatpush2.msra.mxu0 0.0
        %1155 = vmatprep.subr.mxu0 0.0
        %1156 = vmatpush2.msra.mxu0 0.0
        %1157 = vmatprep.subr.mxu0 0.0
        %1158 = vmatpush2.msra.mxu0 0.0
        %1159 = vmatprep.subr.mxu0 0.0
        %1160 = vmatpush2.msra.mxu0 0.0
        %1161 = vmatprep.subr.mxu0 0.0
        %1162 = vmatpush2.msra.mxu0 0.0
        %1163 = vmatprep.subr.mxu0 0.0
        %1164 = vmatpush2.msra.mxu0 0.0
        %1165 = vmatprep.subr.mxu0 0.0
        %1166 = vmatpush2.msra.mxu0 0.0
        %1167 = vmatprep.subr.mxu0 0.0
        %1168 = vmatpush2.msra.mxu0 0.0
        %1169 = vmatprep.subr.mxu0 0.0
        %1170 = vmatpush2.msra.mxu0 0.0
        %1171 = vmatprep.mubr.f32.mxu0 0.0
        %1172 = vmatmul.mubr.f32.gmra.mxu0 %v916
        %v1173 = vpop.f32.mrf.mxu0
        %v1174 = vadd.f32 %v912, %v1173
        %v1175 = vpop.f32.mrf.mxu0
        %1176 = vmatprep.mubr.f32.mxu0 0.0
        %1177 = vmatmul.mubr.f32.gmra.mxu0 %v919
        %v1178 = vpop.f32.mrf.mxu0
        %v1179 = vadd.f32 %v912, %v1178
        %v1180 = vpop.f32.mrf.mxu0
        %1181 = vmatprep.mubr.f32.mxu0 0.0
        %1182 = vmatmul.mubr.f32.gmra.mxu0 %v922
        %v1183 = vpop.f32.mrf.mxu0
        %v1184 = vadd.f32 %v912, %v1183
        %v1185 = vpop.f32.mrf.mxu0
        %1186 = vmatprep.mubr.f32.mxu0 0.0
        %1187 = vmatmul.mubr.f32.gmra.mxu0 %v925
        %v1188 = vpop.f32.mrf.mxu0
        %v1189 = vadd.f32 %v912, %v1188
        %v1190 = vpop.f32.mrf.mxu0
        %1191 = vmatprep.mubr.f32.mxu0 0.0
        %1192 = vmatmul.mubr.f32.gmra.mxu0 %v928
        %v1193 = vpop.f32.mrf.mxu0
        %v1194 = vadd.f32 %v912, %v1193
        %v1195 = vpop.f32.mrf.mxu0
        %1196 = vmatprep.mubr.f32.mxu0 0.0
        %1197 = vmatmul.mubr.f32.gmra.mxu0 %v931
        %v1198 = vpop.f32.mrf.mxu0
        %v1199 = vadd.f32 %v912, %v1198
        %v1200 = vpop.f32.mrf.mxu0
        %1201 = vmatprep.mubr.f32.mxu0 0.0
        %1202 = vmatmul.mubr.f32.gmra.mxu0 %v934
        %v1203 = vpop.f32.mrf.mxu0
        %v1204 = vadd.f32 %v912, %v1203
        %v1205 = vpop.f32.mrf.mxu0
        %1206 = vmatprep.mubr.f32.mxu0 0.0
        %1207 = vmatmul.mubr.f32.gmra.mxu0 %v937
        %v1208 = vpop.f32.mrf.mxu0
        %v1209 = vadd.f32 %v912, %v1208
        %v1210 = vpop.f32.mrf.mxu0
        %1211 = vmatprep.mubr.f32.mxu0 0.0
        %1212 = vmatmul.mubr.f32.gmra.mxu0 %v940
        %v1213 = vpop.f32.mrf.mxu0
        %v1214 = vadd.f32 %v912, %v1213
        %v1215 = vpop.f32.mrf.mxu0
        %1216 = vmatprep.mubr.f32.mxu0 0.0
        %1217 = vmatmul.mubr.f32.gmra.mxu0 %v943
        %v1218 = vpop.f32.mrf.mxu0
        %v1219 = vadd.f32 %v912, %v1218
        %v1220 = vpop.f32.mrf.mxu0
        %1221 = vmatprep.mubr.f32.mxu0 0.0
        %1222 = vmatmul.mubr.f32.gmra.mxu0 %v946
        %v1223 = vpop.f32.mrf.mxu0
        %v1224 = vadd.f32 %v912, %v1223
        %v1225 = vpop.f32.mrf.mxu0
        %1226 = vmatprep.mubr.f32.mxu0 0.0
        %1227 = vmatmul.mubr.f32.gmra.mxu0 %v949
        %v1228 = vpop.f32.mrf.mxu0
        %v1229 = vadd.f32 %v912, %v1228
        %v1230 = vpop.f32.mrf.mxu0
        %1231 = vmatprep.mubr.f32.mxu0 0.0
        %1232 = vmatmul.mubr.f32.gmra.mxu0 %v952
        %v1233 = vpop.f32.mrf.mxu0
        %v1234 = vadd.f32 %v912, %v1233
        %v1235 = vpop.f32.mrf.mxu0
        %1236 = vmatprep.mubr.f32.mxu0 0.0
        %1237 = vmatmul.mubr.f32.gmra.mxu0 %v955
        %v1238 = vpop.f32.mrf.mxu0
        %v1239 = vadd.f32 %v912, %v1238
        %v1240 = vpop.f32.mrf.mxu0
        %1241 = vmatprep.mubr.f32.mxu0 0.0
        %1242 = vmatmul.mubr.f32.gmra.mxu0 %v958
        %v1243 = vpop.f32.mrf.mxu0
        %v1244 = vadd.f32 %v912, %v1243
        %v1245 = vpop.f32.mrf.mxu0
        %1246 = vmatprep.mubr.f32.mxu0 0.0
        %1247 = vmatmul.mubr.f32.gmra.mxu0 %v961
        %v1248 = vpop.f32.mrf.mxu0
        %v1249 = vadd.f32 %v912, %v1248
        %v1250 = vpop.f32.mrf.mxu0
        %1251 = vmatprep.mubr.f32.mxu0 0.0
        %1252 = vmatmul.mubr.f32.gmra.mxu0 %v964
        %v1253 = vpop.f32.mrf.mxu0
        %v1254 = vadd.f32 %v912, %v1253
        %v1255 = vpop.f32.mrf.mxu0
        %1256 = vmatprep.mubr.f32.mxu0 0.0
        %1257 = vmatmul.mubr.f32.gmra.mxu0 %v967
        %v1258 = vpop.f32.mrf.mxu0
        %v1259 = vadd.f32 %v912, %v1258
        %v1260 = vpop.f32.mrf.mxu0
        %1261 = vmatprep.mubr.f32.mxu0 0.0
        %1262 = vmatmul.mubr.f32.gmra.mxu0 %v970
        %v1263 = vpop.f32.mrf.mxu0
        %v1264 = vadd.f32 %v912, %v1263
        %v1265 = vpop.f32.mrf.mxu0
        %1266 = vmatprep.mubr.f32.mxu0 0.0
        %1267 = vmatmul.mubr.f32.gmra.mxu0 %v973
        %v1268 = vpop.f32.mrf.mxu0
        %v1269 = vadd.f32 %v912, %v1268
        %v1270 = vpop.f32.mrf.mxu0
        %1271 = vmatprep.mubr.f32.mxu0 0.0
        %1272 = vmatmul.mubr.f32.gmra.mxu0 %v976
        %v1273 = vpop.f32.mrf.mxu0
        %v1274 = vadd.f32 %v912, %v1273
        %v1275 = vpop.f32.mrf.mxu0
        %1276 = vmatprep.mubr.f32.mxu0 0.0
        %1277 = vmatmul.mubr.f32.gmra.mxu0 %v979
        %v1278 = vpop.f32.mrf.mxu0
        %v1279 = vadd.f32 %v912, %v1278
        %v1280 = vpop.f32.mrf.mxu0
        %1281 = vmatprep.mubr.f32.mxu0 0.0
        %1282 = vmatmul.mubr.f32.gmra.mxu0 %v982
        %v1283 = vpop.f32.mrf.mxu0
        %v1284 = vadd.f32 %v912, %v1283
        %v1285 = vpop.f32.mrf.mxu0
        %1286 = vmatprep.mubr.f32.mxu0 0.0
        %1287 = vmatmul.mubr.f32.gmra.mxu0 %v985
        %v1288 = vpop.f32.mrf.mxu0
        %v1289 = vadd.f32 %v912, %v1288
        %v1290 = vpop.f32.mrf.mxu0
        %1291 = vmatprep.mubr.f32.mxu0 0.0
        %1292 = vmatmul.mubr.f32.gmra.mxu0 %v988
        %v1293 = vpop.f32.mrf.mxu0
        %v1294 = vadd.f32 %v912, %v1293
        %v1295 = vpop.f32.mrf.mxu0
        %1296 = vmatprep.mubr.f32.mxu0 0.0
        %1297 = vmatmul.mubr.f32.gmra.mxu0 %v991
        %v1298 = vpop.f32.mrf.mxu0
        %v1299 = vadd.f32 %v912, %v1298
        %v1300 = vpop.f32.mrf.mxu0
        %1301 = vmatprep.mubr.f32.mxu0 0.0
        %1302 = vmatmul.mubr.f32.gmra.mxu0 %v994
        %v1303 = vpop.f32.mrf.mxu0
        %v1304 = vadd.f32 %v912, %v1303
        %v1305 = vpop.f32.mrf.mxu0
        %1306 = vmatprep.mubr.f32.mxu0 0.0
        %1307 = vmatmul.mubr.f32.gmra.mxu0 %v997
        %v1308 = vpop.f32.mrf.mxu0
        %v1309 = vadd.f32 %v912, %v1308
        %v1310 = vpop.f32.mrf.mxu0
        %1311 = vmatprep.mubr.f32.mxu0 0.0
        %1312 = vmatmul.mubr.f32.gmra.mxu0 %v1000
        %v1313 = vpop.f32.mrf.mxu0
        %v1314 = vadd.f32 %v912, %v1313
        %v1315 = vpop.f32.mrf.mxu0
        %1316 = vmatprep.mubr.f32.mxu0 0.0
        %1317 = vmatmul.mubr.f32.gmra.mxu0 %v1003
        %v1318 = vpop.f32.mrf.mxu0
        %v1319 = vadd.f32 %v912, %v1318
        %v1320 = vpop.f32.mrf.mxu0
        %1321 = vmatprep.mubr.f32.mxu0 0.0
        %1322 = vmatmul.mubr.f32.gmra.mxu0 %v1006
        %v1323 = vpop.f32.mrf.mxu0
        %v1324 = vadd.f32 %v912, %v1323
        %v1325 = vpop.f32.mrf.mxu0
        %1326 = vmatprep.mubr.f32.mxu0 0.0
        %1327 = vmatmul.mubr.f32.gmra.mxu0 %v1009
        %v1328 = vpop.f32.mrf.mxu0
        %v1329 = vadd.f32 %v912, %v1328
        %v1330 = vpop.f32.mrf.mxu0
        %1331 = vmatprep.mubr.f32.mxu0 0.0
        %1332 = vmatmul.mubr.f32.gmra.mxu0 %v1012
        %v1333 = vpop.f32.mrf.mxu0
        %v1334 = vadd.f32 %v912, %v1333
        %v1335 = vpop.f32.mrf.mxu0
        %1336 = vmatprep.mubr.f32.mxu0 0.0
        %1337 = vmatmul.mubr.f32.gmra.mxu0 %v1015
        %v1338 = vpop.f32.mrf.mxu0
        %v1339 = vadd.f32 %v912, %v1338
        %v1340 = vpop.f32.mrf.mxu0
        %1341 = vmatprep.mubr.f32.mxu0 0.0
        %1342 = vmatmul.mubr.f32.gmra.mxu0 %v1018
        %v1343 = vpop.f32.mrf.mxu0
        %v1344 = vadd.f32 %v912, %v1343
        %v1345 = vpop.f32.mrf.mxu0
        %1346 = vmatprep.mubr.f32.mxu0 0.0
        %1347 = vmatmul.mubr.f32.gmra.mxu0 %v1021
        %v1348 = vpop.f32.mrf.mxu0
        %v1349 = vadd.f32 %v912, %v1348
        %v1350 = vpop.f32.mrf.mxu0
        %1351 = vmatprep.mubr.f32.mxu0 0.0
        %1352 = vmatmul.mubr.f32.gmra.mxu0 %v1024
        %v1353 = vpop.f32.mrf.mxu0
        %v1354 = vadd.f32 %v912, %v1353
        %v1355 = vpop.f32.mrf.mxu0
        %1356 = vmatprep.mubr.f32.mxu0 0.0
        %1357 = vmatmul.mubr.f32.gmra.mxu0 %v1027
        %v1358 = vpop.f32.mrf.mxu0
        %v1359 = vadd.f32 %v912, %v1358
        %v1360 = vpop.f32.mrf.mxu0
        %1361 = vmatprep.mubr.f32.mxu0 0.0
        %1362 = vmatmul.mubr.f32.gmra.mxu0 %v1030
        %v1363 = vpop.f32.mrf.mxu0
        %v1364 = vadd.f32 %v912, %v1363
        %v1365 = vpop.f32.mrf.mxu0
        %1366 = vmatprep.mubr.f32.mxu0 0.0
        %1367 = vmatmul.mubr.f32.gmra.mxu0 %v1033
        %v1368 = vpop.f32.mrf.mxu0
        %v1369 = vadd.f32 %v912, %v1368
        %v1370 = vpop.f32.mrf.mxu0
        %1371 = vmatprep.mubr.f32.mxu0 0.0
        %1372 = vmatmul.mubr.f32.gmra.mxu0 %v1036
        %v1373 = vpop.f32.mrf.mxu0
        %v1374 = vadd.f32 %v912, %v1373
        %v1375 = vpop.f32.mrf.mxu0
        %1376 = vmatprep.mubr.f32.mxu0 0.0
        %1377 = vmatmul.mubr.f32.gmra.mxu0 %v1039
        %v1378 = vpop.f32.mrf.mxu0
        %v1379 = vadd.f32 %v912, %v1378
        %v1380 = vpop.f32.mrf.mxu0
        %1381 = vmatprep.mubr.f32.mxu0 0.0
        %1382 = vmatmul.mubr.f32.gmra.mxu0 %v1042
        %v1383 = vpop.f32.mrf.mxu0
        %v1384 = vadd.f32 %v912, %v1383
        %v1385 = vpop.f32.mrf.mxu0
        %1386 = vmatprep.mubr.f32.mxu0 0.0
        %1387 = vmatmul.mubr.f32.gmra.mxu0 %v1045
        %v1388 = vpop.f32.mrf.mxu0
        %v1389 = vadd.f32 %v912, %v1388
        %v1390 = vpop.f32.mrf.mxu0
        %1391 = vmatprep.mubr.f32.mxu0 0.0
        %1392 = vmatmul.mubr.f32.gmra.mxu0 %v1048
        %v1393 = vpop.f32.mrf.mxu0
        %v1394 = vadd.f32 %v912, %v1393
        %v1395 = vpop.f32.mrf.mxu0
        %1396 = vmatprep.mubr.f32.mxu0 0.0
        %1397 = vmatmul.mubr.f32.gmra.mxu0 %v1051
        %v1398 = vpop.f32.mrf.mxu0
        %v1399 = vadd.f32 %v912, %v1398
        %v1400 = vpop.f32.mrf.mxu0
        %1401 = vmatprep.mubr.f32.mxu0 0.0
        %1402 = vmatmul.mubr.f32.gmra.mxu0 %v1054
        %v1403 = vpop.f32.mrf.mxu0
        %v1404 = vadd.f32 %v912, %v1403
        %v1405 = vpop.f32.mrf.mxu0
        %1406 = vmatprep.mubr.f32.mxu0 0.0
        %1407 = vmatmul.mubr.f32.gmra.mxu0 %v1057
        %v1408 = vpop.f32.mrf.mxu0
        %v1409 = vadd.f32 %v912, %v1408
        %v1410 = vpop.f32.mrf.mxu0
        %1411 = vmatprep.mubr.f32.mxu0 0.0
        %1412 = vmatmul.mubr.f32.gmra.mxu0 %v1060
        %v1413 = vpop.f32.mrf.mxu0
        %v1414 = vadd.f32 %v912, %v1413
        %v1415 = vpop.f32.mrf.mxu0
        %1416 = vmatprep.mubr.f32.mxu0 0.0
        %1417 = vmatmul.mubr.f32.gmra.mxu0 %v1063
        %v1418 = vpop.f32.mrf.mxu0
        %v1419 = vadd.f32 %v912, %v1418
        %v1420 = vpop.f32.mrf.mxu0
        %1421 = vmatprep.mubr.f32.mxu0 0.0
        %1422 = vmatmul.mubr.f32.gmra.mxu0 %v1066
        %v1423 = vpop.f32.mrf.mxu0
        %v1424 = vadd.f32 %v912, %v1423
        %v1425 = vpop.f32.mrf.mxu0
        %1426 = vmatprep.mubr.f32.mxu0 0.0
        %1427 = vmatmul.mubr.f32.gmra.mxu0 %v1069
        %v1428 = vpop.f32.mrf.mxu0
        %v1429 = vadd.f32 %v912, %v1428
        %v1430 = vpop.f32.mrf.mxu0
        %1431 = vmatprep.mubr.f32.mxu0 0.0
        %1432 = vmatmul.mubr.f32.gmra.mxu0 %v1072
        %v1433 = vpop.f32.mrf.mxu0
        %v1434 = vadd.f32 %v912, %v1433
        %v1435 = vpop.f32.mrf.mxu0
        %1436 = vmatprep.mubr.f32.mxu0 0.0
        %1437 = vmatmul.mubr.f32.gmra.mxu0 %v1075
        %v1438 = vpop.f32.mrf.mxu0
        %v1439 = vadd.f32 %v912, %v1438
        %v1440 = vpop.f32.mrf.mxu0
        %1441 = vmatprep.mubr.f32.mxu0 0.0
        %1442 = vmatmul.mubr.f32.gmra.mxu0 %v1078
        %v1443 = vpop.f32.mrf.mxu0
        %v1444 = vadd.f32 %v912, %v1443
        %v1445 = vpop.f32.mrf.mxu0
        %1446 = vmatprep.mubr.f32.mxu0 0.0
        %1447 = vmatmul.mubr.f32.gmra.mxu0 %v1081
        %v1448 = vpop.f32.mrf.mxu0
        %v1449 = vadd.f32 %v912, %v1448
        %v1450 = vpop.f32.mrf.mxu0
        %1451 = vmatprep.mubr.f32.mxu0 0.0
        %1452 = vmatmul.mubr.f32.gmra.mxu0 %v1084
        %v1453 = vpop.f32.mrf.mxu0
        %v1454 = vadd.f32 %v912, %v1453
        %v1455 = vpop.f32.mrf.mxu0
        %1456 = vmatprep.mubr.f32.mxu0 0.0
        %1457 = vmatmul.mubr.f32.gmra.mxu0 %v1087
        %v1458 = vpop.f32.mrf.mxu0
        %v1459 = vadd.f32 %v912, %v1458
        %v1460 = vpop.f32.mrf.mxu0
        %1461 = vmatprep.mubr.f32.mxu0 0.0
        %1462 = vmatmul.mubr.f32.gmra.mxu0 %v1090
        %v1463 = vpop.f32.mrf.mxu0
        %v1464 = vadd.f32 %v912, %v1463
        %v1465 = vpop.f32.mrf.mxu0
        %1466 = vmatprep.mubr.f32.mxu0 0.0
        %1467 = vmatmul.mubr.f32.gmra.mxu0 %v1093
        %v1468 = vpop.f32.mrf.mxu0
        %v1469 = vadd.f32 %v912, %v1468
        %v1470 = vpop.f32.mrf.mxu0
        %1471 = vmatprep.mubr.f32.mxu0 0.0
        %1472 = vmatmul.mubr.f32.gmra.mxu0 %v1096
        %v1473 = vpop.f32.mrf.mxu0
        %v1474 = vadd.f32 %v912, %v1473
        %v1475 = vpop.f32.mrf.mxu0
        %1476 = vmatprep.mubr.f32.mxu0 0.0
        %1477 = vmatmul.mubr.f32.gmra.mxu0 %v1099
        %v1478 = vpop.f32.mrf.mxu0
        %v1479 = vadd.f32 %v912, %v1478
        %v1480 = vpop.f32.mrf.mxu0
        %1481 = vmatprep.mubr.f32.mxu0 0.0
        %1482 = vmatmul.mubr.f32.gmra.mxu0 %v1102
        %v1483 = vpop.f32.mrf.mxu0
        %v1484 = vadd.f32 %v912, %v1483
        %v1485 = vpop.f32.mrf.mxu0
        %1486 = vmatprep.mubr.f32.mxu0 0.0
        %1487 = vmatmul.mubr.f32.gmra.mxu0 %v1105
        %v1488 = vpop.f32.mrf.mxu0
        %v1489 = vadd.f32 %v912, %v1488
        %v1490 = vpop.f32.mrf.mxu0
        %1491 = vdwg.mxu0
        %v1492 = vmax.f32 %v1174, 0.0
        %v1493 = vmax.f32 %v1179, 0.0
        %v1494 = vmax.f32 %v1184, 0.0
        %v1495 = vmax.f32 %v1189, 0.0
        %v1496 = vmax.f32 %v1194, 0.0
        %v1497 = vmax.f32 %v1199, 0.0
        %v1498 = vmax.f32 %v1204, 0.0
        %v1499 = vmax.f32 %v1209, 0.0
        %v1500 = vmax.f32 %v1214, 0.0
        %v1501 = vmax.f32 %v1219, 0.0
        %v1502 = vmax.f32 %v1224, 0.0
        %v1503 = vmax.f32 %v1229, 0.0
        %v1504 = vmax.f32 %v1234, 0.0
        %v1505 = vmax.f32 %v1239, 0.0
        %v1506 = vmax.f32 %v1244, 0.0
        %v1507 = vmax.f32 %v1249, 0.0
        %v1508 = vmax.f32 %v1254, 0.0
        %v1509 = vmax.f32 %v1259, 0.0
        %v1510 = vmax.f32 %v1264, 0.0
        %v1511 = vmax.f32 %v1269, 0.0
        %v1512 = vmax.f32 %v1274, 0.0
        %v1513 = vmax.f32 %v1279, 0.0
        %v1514 = vmax.f32 %v1284, 0.0
        %v1515 = vmax.f32 %v1289, 0.0
        %v1516 = vmax.f32 %v1294, 0.0
        %v1517 = vmax.f32 %v1299, 0.0
        %v1518 = vmax.f32 %v1304, 0.0
        %v1519 = vmax.f32 %v1309, 0.0
        %v1520 = vmax.f32 %v1314, 0.0
        %v1521 = vmax.f32 %v1319, 0.0
        %v1522 = vmax.f32 %v1324, 0.0
        %v1523 = vmax.f32 %v1329, 0.0
        %v1524 = vmax.f32 %v1334, 0.0
        %v1525 = vmax.f32 %v1339, 0.0
        %v1526 = vmax.f32 %v1344, 0.0
        %v1527 = vmax.f32 %v1349, 0.0
        %v1528 = vmax.f32 %v1354, 0.0
        %v1529 = vmax.f32 %v1359, 0.0
        %v1530 = vmax.f32 %v1364, 0.0
        %v1531 = vmax.f32 %v1369, 0.0
        %v1532 = vmax.f32 %v1374, 0.0
        %v1533 = vmax.f32 %v1379, 0.0
        %v1534 = vmax.f32 %v1384, 0.0
        %v1535 = vmax.f32 %v1389, 0.0
        %v1536 = vmax.f32 %v1394, 0.0
        %v1537 = vmax.f32 %v1399, 0.0
        %v1538 = vmax.f32 %v1404, 0.0
        %v1539 = vmax.f32 %v1409, 0.0
        %v1540 = vmax.f32 %v1414, 0.0
        %v1541 = vmax.f32 %v1419, 0.0
        %v1542 = vmax.f32 %v1424, 0.0
        %v1543 = vmax.f32 %v1429, 0.0
        %v1544 = vmax.f32 %v1434, 0.0
        %v1545 = vmax.f32 %v1439, 0.0
        %v1546 = vmax.f32 %v1444, 0.0
        %v1547 = vmax.f32 %v1449, 0.0
        %v1548 = vmax.f32 %v1454, 0.0
        %v1549 = vmax.f32 %v1459, 0.0
        %v1550 = vmax.f32 %v1464, 0.0
        %v1551 = vmax.f32 %v1469, 0.0
        %v1552 = vmax.f32 %v1474, 0.0
        %v1553 = vmax.f32 %v1479, 0.0
        %v1554 = vmax.f32 %v1484, 0.0
        %v1555 = vmax.f32 %v1489, 0.0
        %v1556 = vld [vmem:[%s6] sm:$0xff]
        %v1557 = vld [vmem:[%s6 + $0x8] sm:$0xff]
        %v1558 = vld [vmem:[%s6 + $0x10] sm:$0xff]
        %v1559 = vld [vmem:[%s6 + $0x18] sm:$0xff]
        %v1560 = vld [vmem:[%s7] sm:$0x1]
        %v1562 = vlaneseq
        %v1563 = vshrl.u32 %v1562, 7
        %v1564 = vsub.s32 0, %v1563
        %v1565 = vrot.slane %v1560, %v1564
        %v1568 = vsel %vm914, %v1492, 0
        %v1571 = vsel %vm914, %v1493, 0
        %v1574 = vsel %vm914, %v1494, 0
        %v1577 = vsel %vm914, %v1495, 0
        %v1580 = vsel %vm914, %v1496, 0
        %v1583 = vsel %vm914, %v1497, 0
        %v1586 = vsel %vm914, %v1498, 0
        %v1589 = vsel %vm914, %v1499, 0
        %v1592 = vsel %vm914, %v1500, 0
        %v1595 = vsel %vm914, %v1501, 0
        %v1598 = vsel %vm914, %v1502, 0
        %v1601 = vsel %vm914, %v1503, 0
        %v1604 = vsel %vm914, %v1504, 0
        %v1607 = vsel %vm914, %v1505, 0
        %v1610 = vsel %vm914, %v1506, 0
        %v1613 = vsel %vm914, %v1507, 0
        %v1616 = vsel %vm914, %v1508, 0
        %v1619 = vsel %vm914, %v1509, 0
        %v1622 = vsel %vm914, %v1510, 0
        %v1625 = vsel %vm914, %v1511, 0
        %v1628 = vsel %vm914, %v1512, 0
        %v1631 = vsel %vm914, %v1513, 0
        %v1634 = vsel %vm914, %v1514, 0
        %v1637 = vsel %vm914, %v1515, 0
        %v1640 = vsel %vm914, %v1516, 0
        %v1643 = vsel %vm914, %v1517, 0
        %v1646 = vsel %vm914, %v1518, 0
        %v1649 = vsel %vm914, %v1519, 0
        %v1652 = vsel %vm914, %v1520, 0
        %v1655 = vsel %vm914, %v1521, 0
        %v1658 = vsel %vm914, %v1522, 0
        %v1661 = vsel %vm914, %v1523, 0
        %v1664 = vsel %vm914, %v1524, 0
        %v1667 = vsel %vm914, %v1525, 0
        %v1670 = vsel %vm914, %v1526, 0
        %v1673 = vsel %vm914, %v1527, 0
        %v1676 = vsel %vm914, %v1528, 0
        %v1679 = vsel %vm914, %v1529, 0
        %v1682 = vsel %vm914, %v1530, 0
        %v1685 = vsel %vm914, %v1531, 0
        %v1688 = vsel %vm914, %v1532, 0
        %v1691 = vsel %vm914, %v1533, 0
        %v1694 = vsel %vm914, %v1534, 0
        %v1697 = vsel %vm914, %v1535, 0
        %v1700 = vsel %vm914, %v1536, 0
        %v1703 = vsel %vm914, %v1537, 0
        %v1706 = vsel %vm914, %v1538, 0
        %v1709 = vsel %vm914, %v1539, 0
        %v1712 = vsel %vm914, %v1540, 0
        %v1715 = vsel %vm914, %v1541, 0
        %v1718 = vsel %vm914, %v1542, 0
        %v1721 = vsel %vm914, %v1543, 0
        %v1724 = vsel %vm914, %v1544, 0
        %v1727 = vsel %vm914, %v1545, 0
        %v1730 = vsel %vm914, %v1546, 0
        %v1733 = vsel %vm914, %v1547, 0
        %v1736 = vsel %vm914, %v1548, 0
        %v1739 = vsel %vm914, %v1549, 0
        %v1742 = vsel %vm914, %v1550, 0
        %v1745 = vsel %vm914, %v1551, 0
        %v1748 = vsel %vm914, %v1552, 0
        %v1751 = vsel %vm914, %v1553, 0
        %v1754 = vsel %vm914, %v1554, 0
        %v1757 = vsel %vm914, %v1555, 0
        %1759 = vmatprep.subr.mxu0 0.0
        %1760 = vmatpush1.msra.mxu0 0.0
        %1761 = vmatprep.subr.mxu0 0.0
        %1762 = vmatpush1.msra.mxu0 0.0
        %1763 = vmatprep.subr.mxu0 0.0
        %1764 = vmatpush1.msra.mxu0 0.0
        %1765 = vmatprep.subr.mxu0 0.0
        %1766 = vmatpush1.msra.mxu0 0.0
        %1767 = vmatprep.subr.mxu0 0.0
        %1768 = vmatpush1.msra.mxu0 0.0
        %1769 = vmatprep.subr.mxu0 0.0
        %1770 = vmatpush1.msra.mxu0 0.0
        %1771 = vmatprep.subr.mxu0 0.0
        %1772 = vmatpush1.msra.mxu0 0.0
        %1773 = vmatprep.subr.mxu0 0.0
        %1774 = vmatpush1.msra.mxu0 0.0
        %1775 = vmatprep.subr.mxu0 0.0
        %1776 = vmatpush1.msra.mxu0 0.0
        %1777 = vmatprep.subr.mxu0 0.0
        %1778 = vmatpush1.msra.mxu0 0.0
        %1779 = vmatprep.subr.mxu0 0.0
        %1780 = vmatpush1.msra.mxu0 0.0
        %1781 = vmatprep.subr.mxu0 0.0
        %1782 = vmatpush1.msra.mxu0 0.0
        %1783 = vmatprep.subr.mxu0 0.0
        %1784 = vmatpush1.msra.mxu0 %v1559
        %1785 = vmatprep.subr.mxu0 0.0
        %1786 = vmatpush1.msra.mxu0 %v1558
        %1787 = vmatprep.subr.mxu0 0.0
        %1788 = vmatpush1.msra.mxu0 %v1557
        %1789 = vmatprep.subr.mxu0 0.0
        %1790 = vmatpush1.msra.mxu0 %v1556
        %1791 = vmatprep.subr.mxu0 0.0
        %1792 = vmatpush2.msra.mxu0 0.0
        %1793 = vmatprep.subr.mxu0 0.0
        %1794 = vmatpush2.msra.mxu0 0.0
        %1795 = vmatprep.subr.mxu0 0.0
        %1796 = vmatpush2.msra.mxu0 0.0
        %1797 = vmatprep.subr.mxu0 0.0
        %1798 = vmatpush2.msra.mxu0 0.0
        %1799 = vmatprep.subr.mxu0 0.0
        %1800 = vmatpush2.msra.mxu0 0.0
        %1801 = vmatprep.subr.mxu0 0.0
        %1802 = vmatpush2.msra.mxu0 0.0
        %1803 = vmatprep.subr.mxu0 0.0
        %1804 = vmatpush2.msra.mxu0 0.0
        %1805 = vmatprep.subr.mxu0 0.0
        %1806 = vmatpush2.msra.mxu0 0.0
        %1807 = vmatprep.subr.mxu0 0.0
        %1808 = vmatpush2.msra.mxu0 0.0
        %1809 = vmatprep.subr.mxu0 0.0
        %1810 = vmatpush2.msra.mxu0 0.0
        %1811 = vmatprep.subr.mxu0 0.0
        %1812 = vmatpush2.msra.mxu0 0.0
        %1813 = vmatprep.subr.mxu0 0.0
        %1814 = vmatpush2.msra.mxu0 0.0
        %1815 = vmatprep.subr.mxu0 0.0
        %1816 = vmatpush2.msra.mxu0 0.0
        %1817 = vmatprep.subr.mxu0 0.0
        %1818 = vmatpush2.msra.mxu0 0.0
        %1819 = vmatprep.subr.mxu0 0.0
        %1820 = vmatpush2.msra.mxu0 0.0
        %1821 = vmatprep.subr.mxu0 0.0
        %1822 = vmatpush2.msra.mxu0 0.0
        %1823 = vmatprep.mubr.f32.mxu0 0.0
        %1824 = vmatmul.mubr.f32.gmra.mxu0 %v1568
        %v1825 = vpop.f32.mrf.mxu0
        %v1826 = vadd.f32 %v1565, %v1825
        %v1827 = vpop.f32.mrf.mxu0
        %1828 = vmatprep.mubr.f32.mxu0 0.0
        %1829 = vmatmul.mubr.f32.gmra.mxu0 %v1571
        %v1830 = vpop.f32.mrf.mxu0
        %v1831 = vadd.f32 %v1565, %v1830
        %v1832 = vpop.f32.mrf.mxu0
        %1833 = vmatprep.mubr.f32.mxu0 0.0
        %1834 = vmatmul.mubr.f32.gmra.mxu0 %v1574
        %v1835 = vpop.f32.mrf.mxu0
        %v1836 = vadd.f32 %v1565, %v1835
        %v1837 = vpop.f32.mrf.mxu0
        %1838 = vmatprep.mubr.f32.mxu0 0.0
        %1839 = vmatmul.mubr.f32.gmra.mxu0 %v1577
        %v1840 = vpop.f32.mrf.mxu0
        %v1841 = vadd.f32 %v1565, %v1840
        %v1842 = vpop.f32.mrf.mxu0
        %1843 = vmatprep.mubr.f32.mxu0 0.0
        %1844 = vmatmul.mubr.f32.gmra.mxu0 %v1580
        %v1845 = vpop.f32.mrf.mxu0
        %v1846 = vadd.f32 %v1565, %v1845
        %v1847 = vpop.f32.mrf.mxu0
        %1848 = vmatprep.mubr.f32.mxu0 0.0
        %1849 = vmatmul.mubr.f32.gmra.mxu0 %v1583
        %v1850 = vpop.f32.mrf.mxu0
        %v1851 = vadd.f32 %v1565, %v1850
        %v1852 = vpop.f32.mrf.mxu0
        %1853 = vmatprep.mubr.f32.mxu0 0.0
        %1854 = vmatmul.mubr.f32.gmra.mxu0 %v1586
        %v1855 = vpop.f32.mrf.mxu0
        %v1856 = vadd.f32 %v1565, %v1855
        %v1857 = vpop.f32.mrf.mxu0
        %1858 = vmatprep.mubr.f32.mxu0 0.0
        %1859 = vmatmul.mubr.f32.gmra.mxu0 %v1589
        %v1860 = vpop.f32.mrf.mxu0
        %v1861 = vadd.f32 %v1565, %v1860
        %v1862 = vpop.f32.mrf.mxu0
        %1863 = vmatprep.mubr.f32.mxu0 0.0
        %1864 = vmatmul.mubr.f32.gmra.mxu0 %v1592
        %v1865 = vpop.f32.mrf.mxu0
        %v1866 = vadd.f32 %v1565, %v1865
        %v1867 = vpop.f32.mrf.mxu0
        %1868 = vmatprep.mubr.f32.mxu0 0.0
        %1869 = vmatmul.mubr.f32.gmra.mxu0 %v1595
        %v1870 = vpop.f32.mrf.mxu0
        %v1871 = vadd.f32 %v1565, %v1870
        %v1872 = vpop.f32.mrf.mxu0
        %1873 = vmatprep.mubr.f32.mxu0 0.0
        %1874 = vmatmul.mubr.f32.gmra.mxu0 %v1598
        %v1875 = vpop.f32.mrf.mxu0
        %v1876 = vadd.f32 %v1565, %v1875
        %v1877 = vpop.f32.mrf.mxu0
        %1878 = vmatprep.mubr.f32.mxu0 0.0
        %1879 = vmatmul.mubr.f32.gmra.mxu0 %v1601
        %v1880 = vpop.f32.mrf.mxu0
        %v1881 = vadd.f32 %v1565, %v1880
        %v1882 = vpop.f32.mrf.mxu0
        %1883 = vmatprep.mubr.f32.mxu0 0.0
        %1884 = vmatmul.mubr.f32.gmra.mxu0 %v1604
        %v1885 = vpop.f32.mrf.mxu0
        %v1886 = vadd.f32 %v1565, %v1885
        %v1887 = vpop.f32.mrf.mxu0
        %1888 = vmatprep.mubr.f32.mxu0 0.0
        %1889 = vmatmul.mubr.f32.gmra.mxu0 %v1607
        %v1890 = vpop.f32.mrf.mxu0
        %v1891 = vadd.f32 %v1565, %v1890
        %v1892 = vpop.f32.mrf.mxu0
        %1893 = vmatprep.mubr.f32.mxu0 0.0
        %1894 = vmatmul.mubr.f32.gmra.mxu0 %v1610
        %v1895 = vpop.f32.mrf.mxu0
        %v1896 = vadd.f32 %v1565, %v1895
        %v1897 = vpop.f32.mrf.mxu0
        %1898 = vmatprep.mubr.f32.mxu0 0.0
        %1899 = vmatmul.mubr.f32.gmra.mxu0 %v1613
        %v1900 = vpop.f32.mrf.mxu0
        %v1901 = vadd.f32 %v1565, %v1900
        %v1902 = vpop.f32.mrf.mxu0
        %1903 = vmatprep.mubr.f32.mxu0 0.0
        %1904 = vmatmul.mubr.f32.gmra.mxu0 %v1616
        %v1905 = vpop.f32.mrf.mxu0
        %v1906 = vadd.f32 %v1565, %v1905
        %v1907 = vpop.f32.mrf.mxu0
        %1908 = vmatprep.mubr.f32.mxu0 0.0
        %1909 = vmatmul.mubr.f32.gmra.mxu0 %v1619
        %v1910 = vpop.f32.mrf.mxu0
        %v1911 = vadd.f32 %v1565, %v1910
        %v1912 = vpop.f32.mrf.mxu0
        %1913 = vmatprep.mubr.f32.mxu0 0.0
        %1914 = vmatmul.mubr.f32.gmra.mxu0 %v1622
        %v1915 = vpop.f32.mrf.mxu0
        %v1916 = vadd.f32 %v1565, %v1915
        %v1917 = vpop.f32.mrf.mxu0
        %1918 = vmatprep.mubr.f32.mxu0 0.0
        %1919 = vmatmul.mubr.f32.gmra.mxu0 %v1625
        %v1920 = vpop.f32.mrf.mxu0
        %v1921 = vadd.f32 %v1565, %v1920
        %v1922 = vpop.f32.mrf.mxu0
        %1923 = vmatprep.mubr.f32.mxu0 0.0
        %1924 = vmatmul.mubr.f32.gmra.mxu0 %v1628
        %v1925 = vpop.f32.mrf.mxu0
        %v1926 = vadd.f32 %v1565, %v1925
        %v1927 = vpop.f32.mrf.mxu0
        %1928 = vmatprep.mubr.f32.mxu0 0.0
        %1929 = vmatmul.mubr.f32.gmra.mxu0 %v1631
        %v1930 = vpop.f32.mrf.mxu0
        %v1931 = vadd.f32 %v1565, %v1930
        %v1932 = vpop.f32.mrf.mxu0
        %1933 = vmatprep.mubr.f32.mxu0 0.0
        %1934 = vmatmul.mubr.f32.gmra.mxu0 %v1634
        %v1935 = vpop.f32.mrf.mxu0
        %v1936 = vadd.f32 %v1565, %v1935
        %v1937 = vpop.f32.mrf.mxu0
        %1938 = vmatprep.mubr.f32.mxu0 0.0
        %1939 = vmatmul.mubr.f32.gmra.mxu0 %v1637
        %v1940 = vpop.f32.mrf.mxu0
        %v1941 = vadd.f32 %v1565, %v1940
        %v1942 = vpop.f32.mrf.mxu0
        %1943 = vmatprep.mubr.f32.mxu0 0.0
        %1944 = vmatmul.mubr.f32.gmra.mxu0 %v1640
        %v1945 = vpop.f32.mrf.mxu0
        %v1946 = vadd.f32 %v1565, %v1945
        %v1947 = vpop.f32.mrf.mxu0
        %1948 = vmatprep.mubr.f32.mxu0 0.0
        %1949 = vmatmul.mubr.f32.gmra.mxu0 %v1643
        %v1950 = vpop.f32.mrf.mxu0
        %v1951 = vadd.f32 %v1565, %v1950
        %v1952 = vpop.f32.mrf.mxu0
        %1953 = vmatprep.mubr.f32.mxu0 0.0
        %1954 = vmatmul.mubr.f32.gmra.mxu0 %v1646
        %v1955 = vpop.f32.mrf.mxu0
        %v1956 = vadd.f32 %v1565, %v1955
        %v1957 = vpop.f32.mrf.mxu0
        %1958 = vmatprep.mubr.f32.mxu0 0.0
        %1959 = vmatmul.mubr.f32.gmra.mxu0 %v1649
        %v1960 = vpop.f32.mrf.mxu0
        %v1961 = vadd.f32 %v1565, %v1960
        %v1962 = vpop.f32.mrf.mxu0
        %1963 = vmatprep.mubr.f32.mxu0 0.0
        %1964 = vmatmul.mubr.f32.gmra.mxu0 %v1652
        %v1965 = vpop.f32.mrf.mxu0
        %v1966 = vadd.f32 %v1565, %v1965
        %v1967 = vpop.f32.mrf.mxu0
        %1968 = vmatprep.mubr.f32.mxu0 0.0
        %1969 = vmatmul.mubr.f32.gmra.mxu0 %v1655
        %v1970 = vpop.f32.mrf.mxu0
        %v1971 = vadd.f32 %v1565, %v1970
        %v1972 = vpop.f32.mrf.mxu0
        %1973 = vmatprep.mubr.f32.mxu0 0.0
        %1974 = vmatmul.mubr.f32.gmra.mxu0 %v1658
        %v1975 = vpop.f32.mrf.mxu0
        %v1976 = vadd.f32 %v1565, %v1975
        %v1977 = vpop.f32.mrf.mxu0
        %1978 = vmatprep.mubr.f32.mxu0 0.0
        %1979 = vmatmul.mubr.f32.gmra.mxu0 %v1661
        %v1980 = vpop.f32.mrf.mxu0
        %v1981 = vadd.f32 %v1565, %v1980
        %v1982 = vpop.f32.mrf.mxu0
        %1983 = vmatprep.mubr.f32.mxu0 0.0
        %1984 = vmatmul.mubr.f32.gmra.mxu0 %v1664
        %v1985 = vpop.f32.mrf.mxu0
        %v1986 = vadd.f32 %v1565, %v1985
        %v1987 = vpop.f32.mrf.mxu0
        %1988 = vmatprep.mubr.f32.mxu0 0.0
        %1989 = vmatmul.mubr.f32.gmra.mxu0 %v1667
        %v1990 = vpop.f32.mrf.mxu0
        %v1991 = vadd.f32 %v1565, %v1990
        %v1992 = vpop.f32.mrf.mxu0
        %1993 = vmatprep.mubr.f32.mxu0 0.0
        %1994 = vmatmul.mubr.f32.gmra.mxu0 %v1670
        %v1995 = vpop.f32.mrf.mxu0
        %v1996 = vadd.f32 %v1565, %v1995
        %v1997 = vpop.f32.mrf.mxu0
        %1998 = vmatprep.mubr.f32.mxu0 0.0
        %1999 = vmatmul.mubr.f32.gmra.mxu0 %v1673
        %v2000 = vpop.f32.mrf.mxu0
        %v2001 = vadd.f32 %v1565, %v2000
        %v2002 = vpop.f32.mrf.mxu0
        %2003 = vmatprep.mubr.f32.mxu0 0.0
        %2004 = vmatmul.mubr.f32.gmra.mxu0 %v1676
        %v2005 = vpop.f32.mrf.mxu0
        %v2006 = vadd.f32 %v1565, %v2005
        %v2007 = vpop.f32.mrf.mxu0
        %2008 = vmatprep.mubr.f32.mxu0 0.0
        %2009 = vmatmul.mubr.f32.gmra.mxu0 %v1679
        %v2010 = vpop.f32.mrf.mxu0
        %v2011 = vadd.f32 %v1565, %v2010
        %v2012 = vpop.f32.mrf.mxu0
        %2013 = vmatprep.mubr.f32.mxu0 0.0
        %2014 = vmatmul.mubr.f32.gmra.mxu0 %v1682
        %v2015 = vpop.f32.mrf.mxu0
        %v2016 = vadd.f32 %v1565, %v2015
        %v2017 = vpop.f32.mrf.mxu0
        %2018 = vmatprep.mubr.f32.mxu0 0.0
        %2019 = vmatmul.mubr.f32.gmra.mxu0 %v1685
        %v2020 = vpop.f32.mrf.mxu0
        %v2021 = vadd.f32 %v1565, %v2020
        %v2022 = vpop.f32.mrf.mxu0
        %2023 = vmatprep.mubr.f32.mxu0 0.0
        %2024 = vmatmul.mubr.f32.gmra.mxu0 %v1688
        %v2025 = vpop.f32.mrf.mxu0
        %v2026 = vadd.f32 %v1565, %v2025
        %v2027 = vpop.f32.mrf.mxu0
        %2028 = vmatprep.mubr.f32.mxu0 0.0
        %2029 = vmatmul.mubr.f32.gmra.mxu0 %v1691
        %v2030 = vpop.f32.mrf.mxu0
        %v2031 = vadd.f32 %v1565, %v2030
        %v2032 = vpop.f32.mrf.mxu0
        %2033 = vmatprep.mubr.f32.mxu0 0.0
        %2034 = vmatmul.mubr.f32.gmra.mxu0 %v1694
        %v2035 = vpop.f32.mrf.mxu0
        %v2036 = vadd.f32 %v1565, %v2035
        %v2037 = vpop.f32.mrf.mxu0
        %2038 = vmatprep.mubr.f32.mxu0 0.0
        %2039 = vmatmul.mubr.f32.gmra.mxu0 %v1697
        %v2040 = vpop.f32.mrf.mxu0
        %v2041 = vadd.f32 %v1565, %v2040
        %v2042 = vpop.f32.mrf.mxu0
        %2043 = vmatprep.mubr.f32.mxu0 0.0
        %2044 = vmatmul.mubr.f32.gmra.mxu0 %v1700
        %v2045 = vpop.f32.mrf.mxu0
        %v2046 = vadd.f32 %v1565, %v2045
        %v2047 = vpop.f32.mrf.mxu0
        %2048 = vmatprep.mubr.f32.mxu0 0.0
        %2049 = vmatmul.mubr.f32.gmra.mxu0 %v1703
        %v2050 = vpop.f32.mrf.mxu0
        %v2051 = vadd.f32 %v1565, %v2050
        %v2052 = vpop.f32.mrf.mxu0
        %2053 = vmatprep.mubr.f32.mxu0 0.0
        %2054 = vmatmul.mubr.f32.gmra.mxu0 %v1706
        %v2055 = vpop.f32.mrf.mxu0
        %v2056 = vadd.f32 %v1565, %v2055
        %v2057 = vpop.f32.mrf.mxu0
        %2058 = vmatprep.mubr.f32.mxu0 0.0
        %2059 = vmatmul.mubr.f32.gmra.mxu0 %v1709
        %v2060 = vpop.f32.mrf.mxu0
        %v2061 = vadd.f32 %v1565, %v2060
        %v2062 = vpop.f32.mrf.mxu0
        %2063 = vmatprep.mubr.f32.mxu0 0.0
        %2064 = vmatmul.mubr.f32.gmra.mxu0 %v1712
        %v2065 = vpop.f32.mrf.mxu0
        %v2066 = vadd.f32 %v1565, %v2065
        %v2067 = vpop.f32.mrf.mxu0
        %2068 = vmatprep.mubr.f32.mxu0 0.0
        %2069 = vmatmul.mubr.f32.gmra.mxu0 %v1715
        %v2070 = vpop.f32.mrf.mxu0
        %v2071 = vadd.f32 %v1565, %v2070
        %v2072 = vpop.f32.mrf.mxu0
        %2073 = vmatprep.mubr.f32.mxu0 0.0
        %2074 = vmatmul.mubr.f32.gmra.mxu0 %v1718
        %v2075 = vpop.f32.mrf.mxu0
        %v2076 = vadd.f32 %v1565, %v2075
        %v2077 = vpop.f32.mrf.mxu0
        %2078 = vmatprep.mubr.f32.mxu0 0.0
        %2079 = vmatmul.mubr.f32.gmra.mxu0 %v1721
        %v2080 = vpop.f32.mrf.mxu0
        %v2081 = vadd.f32 %v1565, %v2080
        %v2082 = vpop.f32.mrf.mxu0
        %2083 = vmatprep.mubr.f32.mxu0 0.0
        %2084 = vmatmul.mubr.f32.gmra.mxu0 %v1724
        %v2085 = vpop.f32.mrf.mxu0
        %v2086 = vadd.f32 %v1565, %v2085
        %v2087 = vpop.f32.mrf.mxu0
        %2088 = vmatprep.mubr.f32.mxu0 0.0
        %2089 = vmatmul.mubr.f32.gmra.mxu0 %v1727
        %v2090 = vpop.f32.mrf.mxu0
        %v2091 = vadd.f32 %v1565, %v2090
        %v2092 = vpop.f32.mrf.mxu0
        %2093 = vmatprep.mubr.f32.mxu0 0.0
        %2094 = vmatmul.mubr.f32.gmra.mxu0 %v1730
        %v2095 = vpop.f32.mrf.mxu0
        %v2096 = vadd.f32 %v1565, %v2095
        %v2097 = vpop.f32.mrf.mxu0
        %2098 = vmatprep.mubr.f32.mxu0 0.0
        %2099 = vmatmul.mubr.f32.gmra.mxu0 %v1733
        %v2100 = vpop.f32.mrf.mxu0
        %v2101 = vadd.f32 %v1565, %v2100
        %v2102 = vpop.f32.mrf.mxu0
        %2103 = vmatprep.mubr.f32.mxu0 0.0
        %2104 = vmatmul.mubr.f32.gmra.mxu0 %v1736
        %v2105 = vpop.f32.mrf.mxu0
        %v2106 = vadd.f32 %v1565, %v2105
        %v2107 = vpop.f32.mrf.mxu0
        %2108 = vmatprep.mubr.f32.mxu0 0.0
        %2109 = vmatmul.mubr.f32.gmra.mxu0 %v1739
        %v2110 = vpop.f32.mrf.mxu0
        %v2111 = vadd.f32 %v1565, %v2110
        %v2112 = vpop.f32.mrf.mxu0
        %2113 = vmatprep.mubr.f32.mxu0 0.0
        %2114 = vmatmul.mubr.f32.gmra.mxu0 %v1742
        %v2115 = vpop.f32.mrf.mxu0
        %v2116 = vadd.f32 %v1565, %v2115
        %v2117 = vpop.f32.mrf.mxu0
        %2118 = vmatprep.mubr.f32.mxu0 0.0
        %2119 = vmatmul.mubr.f32.gmra.mxu0 %v1745
        %v2120 = vpop.f32.mrf.mxu0
        %v2121 = vadd.f32 %v1565, %v2120
        %v2122 = vpop.f32.mrf.mxu0
        %2123 = vmatprep.mubr.f32.mxu0 0.0
        %2124 = vmatmul.mubr.f32.gmra.mxu0 %v1748
        %v2125 = vpop.f32.mrf.mxu0
        %v2126 = vadd.f32 %v1565, %v2125
        %v2127 = vpop.f32.mrf.mxu0
        %2128 = vmatprep.mubr.f32.mxu0 0.0
        %2129 = vmatmul.mubr.f32.gmra.mxu0 %v1751
        %v2130 = vpop.f32.mrf.mxu0
        %v2131 = vadd.f32 %v1565, %v2130
        %v2132 = vpop.f32.mrf.mxu0
        %2133 = vmatprep.mubr.f32.mxu0 0.0
        %2134 = vmatmul.mubr.f32.gmra.mxu0 %v1754
        %v2135 = vpop.f32.mrf.mxu0
        %v2136 = vadd.f32 %v1565, %v2135
        %v2137 = vpop.f32.mrf.mxu0
        %2138 = vmatprep.mubr.f32.mxu0 0.0
        %2139 = vmatmul.mubr.f32.gmra.mxu0 %v1757
        %v2140 = vpop.f32.mrf.mxu0
        %v2141 = vadd.f32 %v1565, %v2140
        %v2142 = vpop.f32.mrf.mxu0
        %2143 = vdwg.mxu0
        %v2144 = vmax.f32 %v1826, 0.0
        %v2145 = vmax.f32 %v1831, 0.0
        %v2146 = vmax.f32 %v1836, 0.0
        %v2147 = vmax.f32 %v1841, 0.0
        %v2148 = vmax.f32 %v1846, 0.0
        %v2149 = vmax.f32 %v1851, 0.0
        %v2150 = vmax.f32 %v1856, 0.0
        %v2151 = vmax.f32 %v1861, 0.0
        %v2152 = vmax.f32 %v1866, 0.0
        %v2153 = vmax.f32 %v1871, 0.0
        %v2154 = vmax.f32 %v1876, 0.0
        %v2155 = vmax.f32 %v1881, 0.0
        %v2156 = vmax.f32 %v1886, 0.0
        %v2157 = vmax.f32 %v1891, 0.0
        %v2158 = vmax.f32 %v1896, 0.0
        %v2159 = vmax.f32 %v1901, 0.0
        %v2160 = vmax.f32 %v1906, 0.0
        %v2161 = vmax.f32 %v1911, 0.0
        %v2162 = vmax.f32 %v1916, 0.0
        %v2163 = vmax.f32 %v1921, 0.0
        %v2164 = vmax.f32 %v1926, 0.0
        %v2165 = vmax.f32 %v1931, 0.0
        %v2166 = vmax.f32 %v1936, 0.0
        %v2167 = vmax.f32 %v1941, 0.0
        %v2168 = vmax.f32 %v1946, 0.0
        %v2169 = vmax.f32 %v1951, 0.0
        %v2170 = vmax.f32 %v1956, 0.0
        %v2171 = vmax.f32 %v1961, 0.0
        %v2172 = vmax.f32 %v1966, 0.0
        %v2173 = vmax.f32 %v1971, 0.0
        %v2174 = vmax.f32 %v1976, 0.0
        %v2175 = vmax.f32 %v1981, 0.0
        %v2176 = vmax.f32 %v1986, 0.0
        %v2177 = vmax.f32 %v1991, 0.0
        %v2178 = vmax.f32 %v1996, 0.0
        %v2179 = vmax.f32 %v2001, 0.0
        %v2180 = vmax.f32 %v2006, 0.0
        %v2181 = vmax.f32 %v2011, 0.0
        %v2182 = vmax.f32 %v2016, 0.0
        %v2183 = vmax.f32 %v2021, 0.0
        %v2184 = vmax.f32 %v2026, 0.0
        %v2185 = vmax.f32 %v2031, 0.0
        %v2186 = vmax.f32 %v2036, 0.0
        %v2187 = vmax.f32 %v2041, 0.0
        %v2188 = vmax.f32 %v2046, 0.0
        %v2189 = vmax.f32 %v2051, 0.0
        %v2190 = vmax.f32 %v2056, 0.0
        %v2191 = vmax.f32 %v2061, 0.0
        %v2192 = vmax.f32 %v2066, 0.0
        %v2193 = vmax.f32 %v2071, 0.0
        %v2194 = vmax.f32 %v2076, 0.0
        %v2195 = vmax.f32 %v2081, 0.0
        %v2196 = vmax.f32 %v2086, 0.0
        %v2197 = vmax.f32 %v2091, 0.0
        %v2198 = vmax.f32 %v2096, 0.0
        %v2199 = vmax.f32 %v2101, 0.0
        %v2200 = vmax.f32 %v2106, 0.0
        %v2201 = vmax.f32 %v2111, 0.0
        %v2202 = vmax.f32 %v2116, 0.0
        %v2203 = vmax.f32 %v2121, 0.0
        %v2204 = vmax.f32 %v2126, 0.0
        %v2205 = vmax.f32 %v2131, 0.0
        %v2206 = vmax.f32 %v2136, 0.0
        %v2207 = vmax.f32 %v2141, 0.0
        %v2208 = vld [vmem:[%s8] sm:$0x1]
        %v2209 = vld [vmem:[%s9] sm:$0x1]
        %vm2210 = vcmask 64512
        %v2212 = vsel %vm2210, %v2209, 0
        %v2215 = vsel %vm2210, %v839, 0
        %v2218 = vsel %vm2210, %v840, 0
        %v2221 = vsel %vm2210, %v841, 0
        %v2224 = vsel %vm2210, %v842, 0
        %v2227 = vsel %vm2210, %v843, 0
        %v2230 = vsel %vm2210, %v844, 0
        %v2233 = vsel %vm2210, %v845, 0
        %v2236 = vsel %vm2210, %v846, 0
        %v2239 = vsel %vm2210, %v847, 0
        %v2242 = vsel %vm2210, %v848, 0
        %v2245 = vsel %vm2210, %v849, 0
        %v2248 = vsel %vm2210, %v850, 0
        %v2251 = vsel %vm2210, %v851, 0
        %v2254 = vsel %vm2210, %v852, 0
        %v2257 = vsel %vm2210, %v853, 0
        %v2260 = vsel %vm2210, %v854, 0
        %v2263 = vsel %vm2210, %v855, 0
        %v2266 = vsel %vm2210, %v856, 0
        %v2269 = vsel %vm2210, %v857, 0
        %v2272 = vsel %vm2210, %v858, 0
        %v2275 = vsel %vm2210, %v859, 0
        %v2278 = vsel %vm2210, %v860, 0
        %v2281 = vsel %vm2210, %v861, 0
        %v2284 = vsel %vm2210, %v862, 0
        %v2287 = vsel %vm2210, %v863, 0
        %v2290 = vsel %vm2210, %v864, 0
        %v2293 = vsel %vm2210, %v865, 0
        %v2296 = vsel %vm2210, %v866, 0
        %v2299 = vsel %vm2210, %v867, 0
        %v2302 = vsel %vm2210, %v868, 0
        %v2305 = vsel %vm2210, %v869, 0
        %v2308 = vsel %vm2210, %v870, 0
        %v2311 = vsel %vm2210, %v871, 0
        %v2314 = vsel %vm2210, %v872, 0
        %v2317 = vsel %vm2210, %v873, 0
        %v2320 = vsel %vm2210, %v874, 0
        %v2323 = vsel %vm2210, %v875, 0
        %v2326 = vsel %vm2210, %v876, 0
        %v2329 = vsel %vm2210, %v877, 0
        %v2332 = vsel %vm2210, %v878, 0
        %v2335 = vsel %vm2210, %v879, 0
        %v2338 = vsel %vm2210, %v880, 0
        %v2341 = vsel %vm2210, %v881, 0
        %v2344 = vsel %vm2210, %v882, 0
        %v2347 = vsel %vm2210, %v883, 0
        %v2350 = vsel %vm2210, %v884, 0
        %v2353 = vsel %vm2210, %v885, 0
        %v2356 = vsel %vm2210, %v886, 0
        %v2359 = vsel %vm2210, %v887, 0
        %v2362 = vsel %vm2210, %v888, 0
        %v2365 = vsel %vm2210, %v889, 0
        %v2368 = vsel %vm2210, %v890, 0
        %v2371 = vsel %vm2210, %v891, 0
        %v2374 = vsel %vm2210, %v892, 0
        %v2377 = vsel %vm2210, %v893, 0
        %v2380 = vsel %vm2210, %v894, 0
        %v2383 = vsel %vm2210, %v895, 0
        %v2386 = vsel %vm2210, %v896, 0
        %v2389 = vsel %vm2210, %v897, 0
        %v2392 = vsel %vm2210, %v898, 0
        %v2395 = vsel %vm2210, %v899, 0
        %v2398 = vsel %vm2210, %v900, 0
        %v2401 = vsel %vm2210, %v901, 0
        %v2404 = vsel %vm2210, %v902, 0
        %2406 = vmatprep.subr.mxu0 0.0
        %2407 = vmatpush1.xpose.msra.mxu0 %v2260
        %2408 = vmatprep.subr.mxu0 0.0
        %2409 = vmatpush1.xpose.msra.mxu0 %v2257
        %2410 = vmatprep.subr.mxu0 0.0
        %2411 = vmatpush1.xpose.msra.mxu0 %v2254
        %2412 = vmatprep.subr.mxu0 0.0
        %2413 = vmatpush1.xpose.msra.mxu0 %v2251
        %2414 = vmatprep.subr.mxu0 0.0
        %2415 = vmatpush1.xpose.msra.mxu0 %v2248
        %2416 = vmatprep.subr.mxu0 0.0
        %2417 = vmatpush1.xpose.msra.mxu0 %v2245
        %2418 = vmatprep.subr.mxu0 0.0
        %2419 = vmatpush1.xpose.msra.mxu0 %v2242
        %2420 = vmatprep.subr.mxu0 0.0
        %2421 = vmatpush1.xpose.msra.mxu0 %v2239
        %2422 = vmatprep.subr.mxu0 0.0
        %2423 = vmatpush1.xpose.msra.mxu0 %v2236
        %2424 = vmatprep.subr.mxu0 0.0
        %2425 = vmatpush1.xpose.msra.mxu0 %v2233
        %2426 = vmatprep.subr.mxu0 0.0
        %2427 = vmatpush1.xpose.msra.mxu0 %v2230
        %2428 = vmatprep.subr.mxu0 0.0
        %2429 = vmatpush1.xpose.msra.mxu0 %v2227
        %2430 = vmatprep.subr.mxu0 0.0
        %2431 = vmatpush1.xpose.msra.mxu0 %v2224
        %2432 = vmatprep.subr.mxu0 0.0
        %2433 = vmatpush1.xpose.msra.mxu0 %v2221
        %2434 = vmatprep.subr.mxu0 0.0
        %2435 = vmatpush1.xpose.msra.mxu0 %v2218
        %2436 = vmatprep.subr.mxu0 0.0
        %2437 = vmatpush1.xpose.msra.mxu0 %v2215
        %2438 = vmatprep.subr.mxu0 0.0
        %2439 = vmatpush2.xpose.msra.mxu0 %v2308
        %2440 = vmatprep.subr.mxu0 0.0
        %2441 = vmatpush2.xpose.msra.mxu0 %v2305
        %2442 = vmatprep.subr.mxu0 0.0
        %2443 = vmatpush2.xpose.msra.mxu0 %v2302
        %2444 = vmatprep.subr.mxu0 0.0
        %2445 = vmatpush2.xpose.msra.mxu0 %v2299
        %2446 = vmatprep.subr.mxu0 0.0
        %2447 = vmatpush2.xpose.msra.mxu0 %v2296
        %2448 = vmatprep.subr.mxu0 0.0
        %2449 = vmatpush2.xpose.msra.mxu0 %v2293
        %2450 = vmatprep.subr.mxu0 0.0
        %2451 = vmatpush2.xpose.msra.mxu0 %v2290
        %2452 = vmatprep.subr.mxu0 0.0
        %2453 = vmatpush2.xpose.msra.mxu0 %v2287
        %2454 = vmatprep.subr.mxu0 0.0
        %2455 = vmatpush2.xpose.msra.mxu0 %v2284
        %2456 = vmatprep.subr.mxu0 0.0
        %2457 = vmatpush2.xpose.msra.mxu0 %v2281
        %2458 = vmatprep.subr.mxu0 0.0
        %2459 = vmatpush2.xpose.msra.mxu0 %v2278
        %2460 = vmatprep.subr.mxu0 0.0
        %2461 = vmatpush2.xpose.msra.mxu0 %v2275
        %2462 = vmatprep.subr.mxu0 0.0
        %2463 = vmatpush2.xpose.msra.mxu0 %v2272
        %2464 = vmatprep.subr.mxu0 0.0
        %2465 = vmatpush2.xpose.msra.mxu0 %v2269
        %2466 = vmatprep.subr.mxu0 0.0
        %2467 = vmatpush2.xpose.msra.mxu0 %v2266
        %2468 = vmatprep.subr.mxu0 0.0
        %2469 = vmatpush2.xpose.msra.mxu0 %v2263
        %2470 = vmatprep.mubr.f32.mxu0 0.0
        %2471 = vmatmul.mubr.f32.gmra.mxu0 %v2212
        %v2472 = vpop.f32.mrf.mxu0
        %v2473 = vadd.f32 0.0, %v2472
        %v2474 = vpop.f32.mrf.mxu0
        %v2475 = vadd.f32 0.0, %v2474
        %2476 = vdwg.mxu0
        %2477 = vmatprep.subr.mxu0 0.0
        %2478 = vmatpush1.xpose.msra.mxu0 %v2356
        %2479 = vmatprep.subr.mxu0 0.0
        %2480 = vmatpush1.xpose.msra.mxu0 %v2353
        %2481 = vmatprep.subr.mxu0 0.0
        %2482 = vmatpush1.xpose.msra.mxu0 %v2350
        %2483 = vmatprep.subr.mxu0 0.0
        %2484 = vmatpush1.xpose.msra.mxu0 %v2347
        %2485 = vmatprep.subr.mxu0 0.0
        %2486 = vmatpush1.xpose.msra.mxu0 %v2344
        %2487 = vmatprep.subr.mxu0 0.0
        %2488 = vmatpush1.xpose.msra.mxu0 %v2341
        %2489 = vmatprep.subr.mxu0 0.0
        %2490 = vmatpush1.xpose.msra.mxu0 %v2338
        %2491 = vmatprep.subr.mxu0 0.0
        %2492 = vmatpush1.xpose.msra.mxu0 %v2335
        %2493 = vmatprep.subr.mxu0 0.0
        %2494 = vmatpush1.xpose.msra.mxu0 %v2332
        %2495 = vmatprep.subr.mxu0 0.0
        %2496 = vmatpush1.xpose.msra.mxu0 %v2329
        %2497 = vmatprep.subr.mxu0 0.0
        %2498 = vmatpush1.xpose.msra.mxu0 %v2326
        %2499 = vmatprep.subr.mxu0 0.0
        %2500 = vmatpush1.xpose.msra.mxu0 %v2323
        %2501 = vmatprep.subr.mxu0 0.0
        %2502 = vmatpush1.xpose.msra.mxu0 %v2320
        %2503 = vmatprep.subr.mxu0 0.0
        %2504 = vmatpush1.xpose.msra.mxu0 %v2317
        %2505 = vmatprep.subr.mxu0 0.0
        %2506 = vmatpush1.xpose.msra.mxu0 %v2314
        %2507 = vmatprep.subr.mxu0 0.0
        %2508 = vmatpush1.xpose.msra.mxu0 %v2311
        %2509 = vmatprep.subr.mxu0 0.0
        %2510 = vmatpush2.xpose.msra.mxu0 %v2404
        %2511 = vmatprep.subr.mxu0 0.0
        %2512 = vmatpush2.xpose.msra.mxu0 %v2401
        %2513 = vmatprep.subr.mxu0 0.0
        %2514 = vmatpush2.xpose.msra.mxu0 %v2398
        %2515 = vmatprep.subr.mxu0 0.0
        %2516 = vmatpush2.xpose.msra.mxu0 %v2395
        %2517 = vmatprep.subr.mxu0 0.0
        %2518 = vmatpush2.xpose.msra.mxu0 %v2392
        %2519 = vmatprep.subr.mxu0 0.0
        %2520 = vmatpush2.xpose.msra.mxu0 %v2389
        %2521 = vmatprep.subr.mxu0 0.0
        %2522 = vmatpush2.xpose.msra.mxu0 %v2386
        %2523 = vmatprep.subr.mxu0 0.0
        %2524 = vmatpush2.xpose.msra.mxu0 %v2383
        %2525 = vmatprep.subr.mxu0 0.0
        %2526 = vmatpush2.xpose.msra.mxu0 %v2380
        %2527 = vmatprep.subr.mxu0 0.0
        %2528 = vmatpush2.xpose.msra.mxu0 %v2377
        %2529 = vmatprep.subr.mxu0 0.0
        %2530 = vmatpush2.xpose.msra.mxu0 %v2374
        %2531 = vmatprep.subr.mxu0 0.0
        %2532 = vmatpush2.xpose.msra.mxu0 %v2371
        %2533 = vmatprep.subr.mxu0 0.0
        %2534 = vmatpush2.xpose.msra.mxu0 %v2368
        %2535 = vmatprep.subr.mxu0 0.0
        %2536 = vmatpush2.xpose.msra.mxu0 %v2365
        %2537 = vmatprep.subr.mxu0 0.0
        %2538 = vmatpush2.xpose.msra.mxu0 %v2362
        %2539 = vmatprep.subr.mxu0 0.0
        %2540 = vmatpush2.xpose.msra.mxu0 %v2359
        %2541 = vmatprep.mubr.f32.mxu0 0.0
        %2542 = vmatmul.mubr.f32.gmra.mxu0 %v2212
        %v2543 = vpop.f32.mrf.mxu0
        %v2544 = vadd.f32 0.0, %v2543
        %v2545 = vpop.f32.mrf.mxu0
        %v2546 = vadd.f32 0.0, %v2545
        %2547 = vdwg.mxu0
        %v2549 = vsel %vm914, %v2208, 0
        %v2552 = vsel %vm914, %v2144, 0
        %v2555 = vsel %vm914, %v2145, 0
        %v2558 = vsel %vm914, %v2146, 0
        %v2561 = vsel %vm914, %v2147, 0
        %v2564 = vsel %vm914, %v2148, 0
        %v2567 = vsel %vm914, %v2149, 0
        %v2570 = vsel %vm914, %v2150, 0
        %v2573 = vsel %vm914, %v2151, 0
        %v2576 = vsel %vm914, %v2152, 0
        %v2579 = vsel %vm914, %v2153, 0
        %v2582 = vsel %vm914, %v2154, 0
        %v2585 = vsel %vm914, %v2155, 0
        %v2588 = vsel %vm914, %v2156, 0
        %v2591 = vsel %vm914, %v2157, 0
        %v2594 = vsel %vm914, %v2158, 0
        %v2597 = vsel %vm914, %v2159, 0
        %v2600 = vsel %vm914, %v2160, 0
        %v2603 = vsel %vm914, %v2161, 0
        %v2606 = vsel %vm914, %v2162, 0
        %v2609 = vsel %vm914, %v2163, 0
        %v2612 = vsel %vm914, %v2164, 0
        %v2615 = vsel %vm914, %v2165, 0
        %v2618 = vsel %vm914, %v2166, 0
        %v2621 = vsel %vm914, %v2167, 0
        %v2624 = vsel %vm914, %v2168, 0
        %v2627 = vsel %vm914, %v2169, 0
        %v2630 = vsel %vm914, %v2170, 0
        %v2633 = vsel %vm914, %v2171, 0
        %v2636 = vsel %vm914, %v2172, 0
        %v2639 = vsel %vm914, %v2173, 0
        %v2642 = vsel %vm914, %v2174, 0
        %v2645 = vsel %vm914, %v2175, 0
        %v2648 = vsel %vm914, %v2176, 0
        %v2651 = vsel %vm914, %v2177, 0
        %v2654 = vsel %vm914, %v2178, 0
        %v2657 = vsel %vm914, %v2179, 0
        %v2660 = vsel %vm914, %v2180, 0
        %v2663 = vsel %vm914, %v2181, 0
        %v2666 = vsel %vm914, %v2182, 0
        %v2669 = vsel %vm914, %v2183, 0
        %v2672 = vsel %vm914, %v2184, 0
        %v2675 = vsel %vm914, %v2185, 0
        %v2678 = vsel %vm914, %v2186, 0
        %v2681 = vsel %vm914, %v2187, 0
        %v2684 = vsel %vm914, %v2188, 0
        %v2687 = vsel %vm914, %v2189, 0
        %v2690 = vsel %vm914, %v2190, 0
        %v2693 = vsel %vm914, %v2191, 0
        %v2696 = vsel %vm914, %v2192, 0
        %v2699 = vsel %vm914, %v2193, 0
        %v2702 = vsel %vm914, %v2194, 0
        %v2705 = vsel %vm914, %v2195, 0
        %v2708 = vsel %vm914, %v2196, 0
        %v2711 = vsel %vm914, %v2197, 0
        %v2714 = vsel %vm914, %v2198, 0
        %v2717 = vsel %vm914, %v2199, 0
        %v2720 = vsel %vm914, %v2200, 0
        %v2723 = vsel %vm914, %v2201, 0
        %v2726 = vsel %vm914, %v2202, 0
        %v2729 = vsel %vm914, %v2203, 0
        %v2732 = vsel %vm914, %v2204, 0
        %v2735 = vsel %vm914, %v2205, 0
        %v2738 = vsel %vm914, %v2206, 0
        %v2741 = vsel %vm914, %v2207, 0
        %2743 = vmatprep.subr.mxu0 0.0
        %2744 = vmatpush1.xpose.msra.mxu0 %v2597
        %2745 = vmatprep.subr.mxu0 0.0
        %2746 = vmatpush1.xpose.msra.mxu0 %v2594
        %2747 = vmatprep.subr.mxu0 0.0
        %2748 = vmatpush1.xpose.msra.mxu0 %v2591
        %2749 = vmatprep.subr.mxu0 0.0
        %2750 = vmatpush1.xpose.msra.mxu0 %v2588
        %2751 = vmatprep.subr.mxu0 0.0
        %2752 = vmatpush1.xpose.msra.mxu0 %v2585
        %2753 = vmatprep.subr.mxu0 0.0
        %2754 = vmatpush1.xpose.msra.mxu0 %v2582
        %2755 = vmatprep.subr.mxu0 0.0
        %2756 = vmatpush1.xpose.msra.mxu0 %v2579
        %2757 = vmatprep.subr.mxu0 0.0
        %2758 = vmatpush1.xpose.msra.mxu0 %v2576
        %2759 = vmatprep.subr.mxu0 0.0
        %2760 = vmatpush1.xpose.msra.mxu0 %v2573
        %2761 = vmatprep.subr.mxu0 0.0
        %2762 = vmatpush1.xpose.msra.mxu0 %v2570
        %2763 = vmatprep.subr.mxu0 0.0
        %2764 = vmatpush1.xpose.msra.mxu0 %v2567
        %2765 = vmatprep.subr.mxu0 0.0
        %2766 = vmatpush1.xpose.msra.mxu0 %v2564
        %2767 = vmatprep.subr.mxu0 0.0
        %2768 = vmatpush1.xpose.msra.mxu0 %v2561
        %2769 = vmatprep.subr.mxu0 0.0
        %2770 = vmatpush1.xpose.msra.mxu0 %v2558
        %2771 = vmatprep.subr.mxu0 0.0
        %2772 = vmatpush1.xpose.msra.mxu0 %v2555
        %2773 = vmatprep.subr.mxu0 0.0
        %2774 = vmatpush1.xpose.msra.mxu0 %v2552
        %2775 = vmatprep.subr.mxu0 0.0
        %2776 = vmatpush2.xpose.msra.mxu0 %v2645
        %2777 = vmatprep.subr.mxu0 0.0
        %2778 = vmatpush2.xpose.msra.mxu0 %v2642
        %2779 = vmatprep.subr.mxu0 0.0
        %2780 = vmatpush2.xpose.msra.mxu0 %v2639
        %2781 = vmatprep.subr.mxu0 0.0
        %2782 = vmatpush2.xpose.msra.mxu0 %v2636
        %2783 = vmatprep.subr.mxu0 0.0
        %2784 = vmatpush2.xpose.msra.mxu0 %v2633
        %2785 = vmatprep.subr.mxu0 0.0
        %2786 = vmatpush2.xpose.msra.mxu0 %v2630
        %2787 = vmatprep.subr.mxu0 0.0
        %2788 = vmatpush2.xpose.msra.mxu0 %v2627
        %2789 = vmatprep.subr.mxu0 0.0
        %2790 = vmatpush2.xpose.msra.mxu0 %v2624
        %2791 = vmatprep.subr.mxu0 0.0
        %2792 = vmatpush2.xpose.msra.mxu0 %v2621
        %2793 = vmatprep.subr.mxu0 0.0
        %2794 = vmatpush2.xpose.msra.mxu0 %v2618
        %2795 = vmatprep.subr.mxu0 0.0
        %2796 = vmatpush2.xpose.msra.mxu0 %v2615
        %2797 = vmatprep.subr.mxu0 0.0
        %2798 = vmatpush2.xpose.msra.mxu0 %v2612
        %2799 = vmatprep.subr.mxu0 0.0
        %2800 = vmatpush2.xpose.msra.mxu0 %v2609
        %2801 = vmatprep.subr.mxu0 0.0
        %2802 = vmatpush2.xpose.msra.mxu0 %v2606
        %2803 = vmatprep.subr.mxu0 0.0
        %2804 = vmatpush2.xpose.msra.mxu0 %v2603
        %2805 = vmatprep.subr.mxu0 0.0
        %2806 = vmatpush2.xpose.msra.mxu0 %v2600
        %2807 = vmatprep.mubr.f32.mxu0 0.0
        %2808 = vmatmul.mubr.f32.gmra.mxu0 %v2549
        %v2809 = vpop.f32.mrf.mxu0
        %v2810 = vadd.f32 %v2473, %v2809
        %v2811 = vpop.f32.mrf.mxu0
        %v2812 = vadd.f32 %v2475, %v2811
        %2813 = vdwg.mxu0
        %2814 = vmatprep.subr.mxu0 0.0
        %2815 = vmatpush1.xpose.msra.mxu0 %v2693
        %2816 = vmatprep.subr.mxu0 0.0
        %2817 = vmatpush1.xpose.msra.mxu0 %v2690
        %2818 = vmatprep.subr.mxu0 0.0
        %2819 = vmatpush1.xpose.msra.mxu0 %v2687
        %2820 = vmatprep.subr.mxu0 0.0
        %2821 = vmatpush1.xpose.msra.mxu0 %v2684
        %2822 = vmatprep.subr.mxu0 0.0
        %2823 = vmatpush1.xpose.msra.mxu0 %v2681
        %2824 = vmatprep.subr.mxu0 0.0
        %2825 = vmatpush1.xpose.msra.mxu0 %v2678
        %2826 = vmatprep.subr.mxu0 0.0
        %2827 = vmatpush1.xpose.msra.mxu0 %v2675
        %2828 = vmatprep.subr.mxu0 0.0
        %2829 = vmatpush1.xpose.msra.mxu0 %v2672
        %2830 = vmatprep.subr.mxu0 0.0
        %2831 = vmatpush1.xpose.msra.mxu0 %v2669
        %2832 = vmatprep.subr.mxu0 0.0
        %2833 = vmatpush1.xpose.msra.mxu0 %v2666
        %2834 = vmatprep.subr.mxu0 0.0
        %2835 = vmatpush1.xpose.msra.mxu0 %v2663
        %2836 = vmatprep.subr.mxu0 0.0
        %2837 = vmatpush1.xpose.msra.mxu0 %v2660
        %2838 = vmatprep.subr.mxu0 0.0
        %2839 = vmatpush1.xpose.msra.mxu0 %v2657
        %2840 = vmatprep.subr.mxu0 0.0
        %2841 = vmatpush1.xpose.msra.mxu0 %v2654
        %2842 = vmatprep.subr.mxu0 0.0
        %2843 = vmatpush1.xpose.msra.mxu0 %v2651
        %2844 = vmatprep.subr.mxu0 0.0
        %2845 = vmatpush1.xpose.msra.mxu0 %v2648
        %2846 = vmatprep.subr.mxu0 0.0
        %2847 = vmatpush2.xpose.msra.mxu0 %v2741
        %2848 = vmatprep.subr.mxu0 0.0
        %2849 = vmatpush2.xpose.msra.mxu0 %v2738
        %2850 = vmatprep.subr.mxu0 0.0
        %2851 = vmatpush2.xpose.msra.mxu0 %v2735
        %2852 = vmatprep.subr.mxu0 0.0
        %2853 = vmatpush2.xpose.msra.mxu0 %v2732
        %2854 = vmatprep.subr.mxu0 0.0
        %2855 = vmatpush2.xpose.msra.mxu0 %v2729
        %2856 = vmatprep.subr.mxu0 0.0
        %2857 = vmatpush2.xpose.msra.mxu0 %v2726
        %2858 = vmatprep.subr.mxu0 0.0
        %2859 = vmatpush2.xpose.msra.mxu0 %v2723
        %2860 = vmatprep.subr.mxu0 0.0
        %2861 = vmatpush2.xpose.msra.mxu0 %v2720
        %2862 = vmatprep.subr.mxu0 0.0
        %2863 = vmatpush2.xpose.msra.mxu0 %v2717
        %2864 = vmatprep.subr.mxu0 0.0
        %2865 = vmatpush2.xpose.msra.mxu0 %v2714
        %2866 = vmatprep.subr.mxu0 0.0
        %2867 = vmatpush2.xpose.msra.mxu0 %v2711
        %2868 = vmatprep.subr.mxu0 0.0
        %2869 = vmatpush2.xpose.msra.mxu0 %v2708
        %2870 = vmatprep.subr.mxu0 0.0
        %2871 = vmatpush2.xpose.msra.mxu0 %v2705
        %2872 = vmatprep.subr.mxu0 0.0
        %2873 = vmatpush2.xpose.msra.mxu0 %v2702
        %2874 = vmatprep.subr.mxu0 0.0
        %2875 = vmatpush2.xpose.msra.mxu0 %v2699
        %2876 = vmatprep.subr.mxu0 0.0
        %2877 = vmatpush2.xpose.msra.mxu0 %v2696
        %2878 = vmatprep.mubr.f32.mxu0 0.0
        %2879 = vmatmul.mubr.f32.gmra.mxu0 %v2549
        %v2880 = vpop.f32.mrf.mxu0
        %v2881 = vadd.f32 %v2544, %v2880
        %v2882 = vpop.f32.mrf.mxu0
        %v2883 = vadd.f32 %v2546, %v2882
        %2884 = vdwg.mxu0
        %s2885 = sld [smem:[#allocation2]]
        %v2886 = vstv %s2885
        %v2887 = vadd.f32 %v2810, %v2886
        %v2888 = vadd.f32 %v2812, %v2886
        %v2889 = vadd.f32 %v2881, %v2886
        %v2890 = vadd.f32 %v2883, %v2886
        %v2891 = vxor.u32 %v2887, 2147483648
        %v2892 = vxor.u32 %v2888, 2147483648
        %v2893 = vxor.u32 %v2889, 2147483648
        %v2894 = vxor.u32 %v2890, 2147483648
        %v2895 = vmul.f32 %v2891, 1.442695
        %v2896 = vpow.pop %v2895
        %v2897 = vmul.f32 %v2892, 1.442695
        %v2898 = vpow.pop %v2897
        %v2899 = vmul.f32 %v2893, 1.442695
        %v2900 = vpow.pop %v2899
        %v2901 = vmul.f32 %v2894, 1.442695
        %v2902 = vpow.pop %v2901
        %v2903 = vadd.f32 %v2896, 1.0
        %v2904 = vadd.f32 %v2898, 1.0
        %v2905 = vadd.f32 %v2900, 1.0
        %v2906 = vadd.f32 %v2902, 1.0
        %v2907 = vrcp.pop %v2903
        %v2908 = vmul.f32 1.0, %v2907
        %v2909 = vrcp.pop %v2904
        %v2910 = vmul.f32 1.0, %v2909
        %v2911 = vrcp.pop %v2905
        %v2912 = vmul.f32 1.0, %v2911
        %v2913 = vrcp.pop %v2906
        %v2914 = vmul.f32 1.0, %v2913
        %v2919 = vcombine.low %v2908, %v2910
        %v2920 = vcombine.low %v2912, %v2914
        %v2922 = vunpack.c.l.s4 1966171168
        %v2923 = vunpack.c.0.s8 %v2922
        %v2924 = vlaneseq
        %v2925 = vshrl.u32 %v2924, 7
        %v2926 = vsub.s32 %v2923, %v2925
        %v2927 = vrot.slane %v2919, %v2926
        %v2929 = vunpack.c.l.s4 1966171168
        %v2930 = vunpack.c.0.s8 %v2929
        %v2931 = vlaneseq
        %v2932 = vshrl.u32 %v2931, 7
        %v2933 = vsub.s32 %v2930, %v2932
        %v2934 = vrot.slane %v2920, %v2933
        %v2935 = vcombine.low %v2927, %v2934
        %v2937 = vunpack.c.l.s4 1966171168
        %v2938 = vunpack.c.0.s8 %v2937
        %v2939 = vlaneseq
        %v2940 = vshrl.u32 %v2939, 7
        %v2941 = vsub.s32 %v2938, %v2940
        %v2942 = vrot.slane %v2935, %v2941
        %v2944 = vlaneseq
        %vm2945 = vcmp.ge.s32.totalorder %v2944, 0
        %vm2946 = vcmp.lt.s32.totalorder %v2944, 512
        %vm2947 = vmand %vm2945, %vm2946
        %2948 = vst.msk [vmem:[%s429] sm:$0xf] %vm2947, %v2942
        %s2949 = sand.u32 %s285, 1
        %s2950 = scalar_lea.sflag [#allocation4], %s2949
        %s2951 = sand.u32 %s285, 1
        %s2952 = smul.addr %s2951, 4
        %s2953 = scalar_lea.vmem [#allocation3], %s2952
        // Predicated region
        $region65: #{tpu_custom_call.1} parent=63 // pred_check
          %p2954 = pneg %p295
        $region66: #{tpu_custom_call.1} parent=63 // pred_check_branch
          %2956 = sbr.rel (%p2954) target = $region68
        $region67: #{tpu_custom_call.1} parent=63 // pred_region
          %s2957 = smul.u32 4, %s26
          %s2959 = ssub.s32 64, 64
          %2960 = vsyncadd %s2950, %s2959
          %s2961 = smul.addr %s2957, 16
          %s2962 = scalar_lea.hbm %s11, %s2961
          %s2964 = sshll.u32 %s2953, 4
          %s2965 = int_to_ptr.vmem [resolvable:$true] %s2964
          %2967 = dma.vmem_to_hbm [thread:$0]  %s2965, 64, %s2962, %s2950
        $region68: #{tpu_custom_call.1} parent=63 // pred_fallthru
          _
      $region64: #{tpu_custom_call.1} parent=5 // pred_fallthru
        _
      %p2968 = scmp.le.s32.totalorder 2, %s21
      // Predicated region
      $region69: #{tpu_custom_call.1} parent=5 // pred_check
        %p2969 = pneg %p2968
      $region70: #{tpu_custom_call.1} parent=5 // pred_check_branch
        %2971 = sbr.rel (%p2969) target = $region72
      $region71: #{tpu_custom_call.1} parent=5 // pred_region
        %s2972 = ssub.s32 %s21, 2
        // Predicated region
        $region73: #{tpu_custom_call.1} parent=71 // pred_check
          %p2973 = pneg %p301
        $region74: #{tpu_custom_call.1} parent=71 // pred_check_branch
          %2975 = sbr.rel (%p2973) target = $region76
        $region75: #{tpu_custom_call.1} parent=71 // pred_region
          %s2976 = sand.u32 %s286, 1
          %s2977 = scalar_lea.sflag [#allocation4], %s2976
          %s2978 = sand.u32 %s286, 1
          %s2979 = smul.addr %s2978, 4
          %s2980 = scalar_lea.vmem [#allocation3], %s2979
          %2981 = dma.done %s2977, 64
        $region76: #{tpu_custom_call.1} parent=71 // pred_fallthru
          _
      $region72: #{tpu_custom_call.1} parent=5 // pred_fallthru
        _
    $region6: #{tpu_custom_call.1} parent=1 // loop_footer
      %s25 = sadd.s32 1, %s21
    $region7: #{tpu_custom_call.1} parent=1 // loop_footer_branch
      %20 = sbr.rel target = $region3
    $region8: #{tpu_custom_call.1} parent=1 // loop_exit
      _
    %2982 = vsyncpa [#allocation4], 1
    %s2983 = scalar_lea.sflag [#allocation4], 1
    %2984 = vsyncpa %s2983, 1

</llo_original>
